<compile_context>
chip_gen: v7x
topology: tpu7x:2x2x1
jax: 0.10.0
libtpu: 0.0.40
codegen_flags: <defaults>
</compile_context>

<pallas_src>
import functools

import jax
import jax.numpy as jnp
from jax.experimental import pallas as pl
from jax.experimental.pallas import tpu as pltpu


# ----------------------------------------------------------------------------
# Fused kernel: batched input gates + serial GRU + deferred logits/softmax NLL
# ----------------------------------------------------------------------------
def doggen_nll_kernel(
    feats_ref,   # [T*B, F]   bf16  raw molecule features, time-major flattened
    tgt_ref,     # [T*B, 1]   int32 target action indices (same row order)
    h0_ref,      # [1, H]     f32   tanh(bz)  (z0 is all zeros -> z0@wz elided)
    wfx_ref,     # [F, 3H]    bf16  folded wemb @ wx   (z|r|n)
    bfx_ref,     # [1, 3H]    f32   folded bemb @ wx + bg
    wh_ref,      # [H, 3H]    bf16  fused GRU hidden weights (z|r|n)
    wo_ref,      # [H, V]     bf16  action-logit projection
    bo_ref,      # [1, V]     f32   action-logit bias
    loss_ref,    # [1, 1]     f32   output: summed NLL
    gx_ref,      # [T*B, 3H]  f32   scratch: precomputed input-gate activations
    hseq_ref,    # [T*B, H]   f32   scratch: hidden states for deferred NLL
    *,
    T,
    B,
):
    H = wh_ref.shape[0]
    V = wo_ref.shape[1]

    wh = wh_ref[...]  # VMEM-resident; load once outside the time loop.

    # (1) Batched input-gate matmul: one MXU push at M = T*B (embedding already
    #     folded into wfx/bfx in the wrapper).
    gx_ref[...] = (
        jnp.dot(feats_ref[...], wfx_ref[...], preferred_element_type=jnp.float32)
        + bfx_ref[...]
    )

    # (2) Serial GRU recurrence: per step only h @ Wh (MXU) + f32 VPU gate math.
    h0 = jnp.zeros((B, H), jnp.float32) + h0_ref[...]          # broadcast [1,H]->[B,H]

    def step(t, h):
        row = pl.multiple_of(t * B, B)                          # sublane-aligned
        gx = gx_ref[pl.ds(row, B), :]                           # [B, 3H] f32
        gh = jnp.dot(
            h.astype(jnp.bfloat16), wh, preferred_element_type=jnp.float32
        )                                                       # [B, 3H] f32
        z = jax.nn.sigmoid(gx[:, 0:H] + gh[:, 0:H])
        r = jax.nn.sigmoid(gx[:, H:2 * H] + gh[:, H:2 * H])
        n = jnp.tanh(gx[:, 2 * H:3 * H] + r * gh[:, 2 * H:3 * H])
        h_new = (1.0 - z) * n + z * h                           # f32 vector math
        hseq_ref[pl.ds(row, B), :] = h_new
        return h_new

    jax.lax.fori_loop(0, T, step, h0, unroll=True)

    # (3) Deferred output projection + log-softmax NLL: one batched pass at
    #     M = T*B, fully overlappable (off the serial chain).
    h_all = hseq_ref[...]                                       # [T*B, H] f32
    logits = (
        jnp.dot(h_all.astype(jnp.bfloat16), wo_ref[...],
                preferred_element_type=jnp.float32)
        + bo_ref[...]
    )                                                           # [T*B, V] f32
    m = jnp.max(logits, axis=-1, keepdims=True)
    lse = m + jnp.log(jnp.sum(jnp.exp(logits - m), axis=-1, keepdims=True))
    lane_iota = jax.lax.broadcasted_iota(jnp.int32, (T * B, V), 1)
    picked = jnp.sum(
        jnp.where(lane_iota == tgt_ref[...], logits, 0.0), axis=-1, keepdims=True
    )                                                           # [T*B, 1]
    loss_ref[...] = jnp.sum(lse - picked, keepdims=True)        # written once


def doggen_nll(feats_flat, tgt_flat, fused, *, T, B):
    """feats_flat: [T*B, F] bf16, tgt_flat: [T*B, 1] int32 -> scalar NLL."""
    TB, F = feats_flat.shape
    H = fused["wh"].shape[0]
    H3 = 3 * H
    V = fused["wo"].shape[1]

    kernel = functools.partial(doggen_nll_kernel, T=T, B=B)

    flops = int(
        2 * TB * F * H3            # batched input-gate matmul
        + 2 * TB * H * H3          # recurrent matmuls (total over T steps)
        + 2 * TB * H * V           # deferred output projection
        + 12 * TB * H3             # gate VPU math (rough)
        + 6 * TB * V               # softmax / gather VPU math (rough)
    )
    transcendentals = int(3 * TB * H + TB * V)   # sigmoid/tanh gates + exp
    bytes_accessed = int(
        feats_flat.size * 2
        + tgt_flat.size * 4
        + (F * H3 + H * H3 + H * V) * 2          # bf16 weights
        + (H + H3 + V) * 4                       # f32 biases / h0
        + 4                                      # loss
    )

    vmem_spec = pl.BlockSpec(memory_space=pltpu.MemorySpace.VMEM)
    loss = pl.pallas_call(
        kernel,
        out_shape=jax.ShapeDtypeStruct((1, 1), jnp.float32),
        in_specs=[vmem_spec] * 8,
        out_specs=pl.BlockSpec(memory_space=pltpu.MemorySpace.VMEM),
        scratch_shapes=[
            pltpu.VMEM((TB, H3), jnp.float32),   # gx_ref   (24 KiB at ref sizes)
            pltpu.VMEM((TB, H), jnp.float32),    # hseq_ref ( 8 KiB at ref sizes)
        ],
        cost_estimate=pl.CostEstimate(
            flops=flops,
            transcendentals=transcendentals,
            bytes_accessed=bytes_accessed,
        ),
    )(
        feats_flat,
        tgt_flat,
        fused["h0"],
        fused["wfx"],
        fused["bfx"],
        fused["wh"],
        fused["wo"],
        fused["bo"],
    )
    return loss[0, 0]


# ----------------------------------------------------------------------------
# Parameter construction + one-time algebraic folds (wrapper side, f32)
# ----------------------------------------------------------------------------
def make_params(key, F, E, Z, H, V):
    del Z  # z0 is all zeros -> the [Z,H] init projection is a no-op; only bz survives.
    ks = jax.random.split(key, 8)
    s = 0.1
    return {
        "wemb": s * jax.random.normal(ks[0], (F, E), jnp.float32),
        "bemb": s * jax.random.normal(ks[1], (1, E), jnp.float32),
        "bz":   s * jax.random.normal(ks[2], (1, H), jnp.float32),
        "wx":   s * jax.random.normal(ks[3], (E, 3 * H), jnp.float32),  # z|r|n fused
        "wh":   s * jax.random.normal(ks[4], (H, 3 * H), jnp.float32),  # z|r|n fused
        "bg":   s * jax.random.normal(ks[5], (1, 3 * H), jnp.float32),
        "wo":   s * jax.random.normal(ks[6], (H, V), jnp.float32),
        "bo":   s * jax.random.normal(ks[7], (1, V), jnp.float32),
    }


def fuse_params(params):
    """One-time, parameter-only folds (done in f32 before the bf16 cast)."""
    wfx = params["wemb"] @ params["wx"]                        # [F, 3H]
    bfx = params["bemb"] @ params["wx"] + params["bg"]         # [1, 3H]
    h0 = jnp.tanh(params["bz"])                                # [1, H]  (z0 == 0)
    return {
        "h0":  h0,
        "wfx": wfx.astype(jnp.bfloat16),
        "bfx": bfx,
        "wh":  params["wh"].astype(jnp.bfloat16),
        "wo":  params["wo"].astype(jnp.bfloat16),
        "bo":  params["bo"],
    }


# ----------------------------------------------------------------------------
# End-to-end DogGen.forward equivalent
# ----------------------------------------------------------------------------
@jax.jit
def doggen_forward(mol_feats, targets, params):
    # mol_feats: [B, T, F] f32 raw molecule features, targets: [B, T] int32.
    B, T, F = mol_feats.shape
    fused = fuse_params(params)
    # Time-major flatten so kernel row index == t*B + b (recurrence slices and
    # the deferred target gather share this ordering).
    feats_flat = (
        mol_feats.transpose(1, 0, 2).astype(jnp.bfloat16).reshape(T * B, F)
    )
    tgt_flat = targets.transpose(1, 0).reshape(T * B, 1).astype(jnp.int32)
    return doggen_nll(feats_flat, tgt_flat, fused, T=T, B=B)


if __name__ == "__main__":
    B, T, F, E, Z, H, V = 8, 8, 16, 32, 16, 32, 128

    key = jax.random.PRNGKey(0)
    k_par, k_x, k_t = jax.random.split(key, 3)

    params = make_params(k_par, F, E, Z, H, V)
    mol_feats = jax.random.normal(k_x, (B, T, F), jnp.float32)
    targets = jax.random.randint(k_t, (B, T), 0, V, jnp.int32)

    loss = doggen_forward(mol_feats, targets, params)
    jax.block_until_ready(loss)

    assert loss.shape == () and jnp.isfinite(loss)
    print("KERNEL_OK")
</pallas_src>

<mosaic_0001>
module attributes {stable_mosaic.version = 11 : i64} {
  func.func @doggen_nll_kernel(%arg0: memref<64x16xbf16, #tpu.memory_space<vmem>>, %arg1: memref<64x1xi32, #tpu.memory_space<vmem>>, %arg2: memref<1x32xf32, #tpu.memory_space<vmem>>, %arg3: memref<16x96xbf16, #tpu.memory_space<vmem>>, %arg4: memref<1x96xf32, #tpu.memory_space<vmem>>, %arg5: memref<32x96xbf16, #tpu.memory_space<vmem>>, %arg6: memref<32x128xbf16, #tpu.memory_space<vmem>>, %arg7: memref<1x128xf32, #tpu.memory_space<vmem>>, %arg8: memref<1x1xf32, #tpu.memory_space<vmem>>, %arg9: memref<64x96xf32, #tpu.memory_space<vmem>>, %arg10: memref<64x32xf32, #tpu.memory_space<vmem>>) attributes {dimension_semantics = [], scalar_prefetch = 0 : i64, scratch_operands = 2 : i64, tpu.core_type = #tpu.core_type<tc>} {
    %c0 = arith.constant 0 : index
    %c0_0 = arith.constant 0 : index
    %0 = vector.load %arg5[%c0, %c0_0] : memref<32x96xbf16, #tpu.memory_space<vmem>>, vector<32x96xbf16>
    %c0_1 = arith.constant 0 : index
    %c0_2 = arith.constant 0 : index
    %1 = vector.load %arg0[%c0_1, %c0_2] : memref<64x16xbf16, #tpu.memory_space<vmem>>, vector<64x16xbf16>
    %c0_3 = arith.constant 0 : index
    %c0_4 = arith.constant 0 : index
    %2 = vector.load %arg3[%c0_3, %c0_4] : memref<16x96xbf16, #tpu.memory_space<vmem>>, vector<16x96xbf16>
    %cst = arith.constant dense<0.000000e+00> : vector<64x96xf32>
    %3 = tpu.matmul %1, %2, %cst {dimension_numbers = #tpu.dot_dimension_numbers<[1], [0], [0], [1], [0, 0, 1, 1], [], []>} : vector<64x16xbf16>, vector<16x96xbf16>, vector<64x96xf32> -> vector<64x96xf32>
    %c0_5 = arith.constant 0 : index
    %c0_6 = arith.constant 0 : index
    %4 = vector.load %arg4[%c0_5, %c0_6] : memref<1x96xf32, #tpu.memory_space<vmem>>, vector<1x96xf32>
    %5 = vector.broadcast %4 : vector<1x96xf32> to vector<64x96xf32>
    %6 = arith.addf %3, %5 : vector<64x96xf32>
    %c0_7 = arith.constant 0 : index
    %c0_8 = arith.constant 0 : index
    %7 = vector.load %arg9[%c0_7, %c0_8] : memref<64x96xf32, #tpu.memory_space<vmem>>, vector<64x96xf32>
    tpu.vector_store %arg9[%c0_7, %c0_8], %6 {strides = array<i32>} : memref<64x96xf32, #tpu.memory_space<vmem>>, vector<64x96xf32>,
    %cst_9 = arith.constant 0.000000e+00 : f32
    %8 = vector.broadcast %cst_9 : f32 to vector<8x32xf32>
    %c0_10 = arith.constant 0 : index
    %c0_11 = arith.constant 0 : index
    %9 = vector.load %arg2[%c0_10, %c0_11] : memref<1x32xf32, #tpu.memory_space<vmem>>, vector<1x32xf32>
    %10 = vector.broadcast %9 : vector<1x32xf32> to vector<8x32xf32>
    %11 = arith.addf %8, %10 : vector<8x32xf32>
    %c0_i32 = arith.constant 0 : i32
    %c8_i32 = arith.constant 8 : i32
    %12 = arith.muli %c0_i32, %c8_i32 : i32
    %13 = tpu.assume_multiple %12, 8 : i32
    %14 = arith.index_cast %13 : i32 to index
    %c0_12 = arith.constant 0 : index
    %15 = vector.load %arg9[%14, %c0_12] : memref<64x96xf32, #tpu.memory_space<vmem>>, vector<8x96xf32>
    %16 = arith.truncf %11 : vector<8x32xf32> to vector<8x32xbf16>
    %cst_13 = arith.constant dense<0.000000e+00> : vector<8x96xf32>
    %17 = tpu.matmul %16, %0, %cst_13 {dimension_numbers = #tpu.dot_dimension_numbers<[1], [0], [0], [1], [0, 0, 1, 1], [], []>} : vector<8x32xbf16>, vector<32x96xbf16>, vector<8x96xf32> -> vector<8x96xf32>
    %18 = vector.extract_strided_slice %15 {offsets = [0, 0], sizes = [8, 32], strides = [1, 1]} : vector<8x96xf32> to vector<8x32xf32>
    %19 = vector.extract_strided_slice %17 {offsets = [0, 0], sizes = [8, 32], strides = [1, 1]} : vector<8x96xf32> to vector<8x32xf32>
    %20 = arith.addf %18, %19 : vector<8x32xf32>
    %21 = arith.negf %20 : vector<8x32xf32>
    %22 = math.exp %21 : vector<8x32xf32>
    %cst_14 = arith.constant 1.000000e+00 : f32
    %23 = vector.broadcast %cst_14 : f32 to vector<8x32xf32>
    %24 = arith.addf %23, %22 : vector<8x32xf32>
    %25 = arith.divf %23, %24 : vector<8x32xf32>
    %26 = vector.extract_strided_slice %15 {offsets = [0, 32], sizes = [8, 32], strides = [1, 1]} : vector<8x96xf32> to vector<8x32xf32>
    %27 = vector.extract_strided_slice %17 {offsets = [0, 32], sizes = [8, 32], strides = [1, 1]} : vector<8x96xf32> to vector<8x32xf32>
    %28 = arith.addf %26, %27 : vector<8x32xf32>
    %29 = arith.negf %28 : vector<8x32xf32>
    %30 = math.exp %29 : vector<8x32xf32>
    %cst_15 = arith.constant 1.000000e+00 : f32
    %31 = vector.broadcast %cst_15 : f32 to vector<8x32xf32>
    %32 = arith.addf %31, %30 : vector<8x32xf32>
    %33 = arith.divf %31, %32 : vector<8x32xf32>
    %34 = vector.extract_strided_slice %15 {offsets = [0, 64], sizes = [8, 32], strides = [1, 1]} : vector<8x96xf32> to vector<8x32xf32>
    %35 = vector.extract_strided_slice %17 {offsets = [0, 64], sizes = [8, 32], strides = [1, 1]} : vector<8x96xf32> to vector<8x32xf32>
    %36 = arith.mulf %33, %35 : vector<8x32xf32>
    %37 = arith.addf %34, %36 : vector<8x32xf32>
    %38 = math.tanh %37 : vector<8x32xf32>
    %cst_16 = arith.constant 1.000000e+00 : f32
    %39 = vector.broadcast %cst_16 : f32 to vector<8x32xf32>
    %40 = arith.subf %39, %25 : vector<8x32xf32>
    %41 = arith.mulf %40, %38 : vector<8x32xf32>
    %42 = arith.mulf %25, %11 : vector<8x32xf32>
    %43 = arith.addf %41, %42 : vector<8x32xf32>
    %44 = arith.index_cast %13 : i32 to index
    %c0_17 = arith.constant 0 : index
    %45 = vector.load %arg10[%44, %c0_17] : memref<64x32xf32, #tpu.memory_space<vmem>>, vector<8x32xf32>
    tpu.vector_store %arg10[%44, %c0_17], %43 {strides = array<i32>} : memref<64x32xf32, #tpu.memory_space<vmem>>, vector<8x32xf32>,
    %c1_i32 = arith.constant 1 : i32
    %c8_i32_18 = arith.constant 8 : i32
    %46 = arith.muli %c1_i32, %c8_i32_18 : i32
    %47 = tpu.assume_multiple %46, 8 : i32
    %48 = arith.index_cast %47 : i32 to index
    %c0_19 = arith.constant 0 : index
    %49 = vector.load %arg9[%48, %c0_19] : memref<64x96xf32, #tpu.memory_space<vmem>>, vector<8x96xf32>
    %50 = arith.truncf %43 : vector<8x32xf32> to vector<8x32xbf16>
    %cst_20 = arith.constant dense<0.000000e+00> : vector<8x96xf32>
    %51 = tpu.matmul %50, %0, %cst_20 {dimension_numbers = #tpu.dot_dimension_numbers<[1], [0], [0], [1], [0, 0, 1, 1], [], []>} : vector<8x32xbf16>, vector<32x96xbf16>, vector<8x96xf32> -> vector<8x96xf32>
    %52 = vector.extract_strided_slice %49 {offsets = [0, 0], sizes = [8, 32], strides = [1, 1]} : vector<8x96xf32> to vector<8x32xf32>
    %53 = vector.extract_strided_slice %51 {offsets = [0, 0], sizes = [8, 32], strides = [1, 1]} : vector<8x96xf32> to vector<8x32xf32>
    %54 = arith.addf %52, %53 : vector<8x32xf32>
    %55 = arith.negf %54 : vector<8x32xf32>
    %56 = math.exp %55 : vector<8x32xf32>
    %cst_21 = arith.constant 1.000000e+00 : f32
    %57 = vector.broadcast %cst_21 : f32 to vector<8x32xf32>
    %58 = arith.addf %57, %56 : vector<8x32xf32>
    %59 = arith.divf %57, %58 : vector<8x32xf32>
    %60 = vector.extract_strided_slice %49 {offsets = [0, 32], sizes = [8, 32], strides = [1, 1]} : vector<8x96xf32> to vector<8x32xf32>
    %61 = vector.extract_strided_slice %51 {offsets = [0, 32], sizes = [8, 32], strides = [1, 1]} : vector<8x96xf32> to vector<8x32xf32>
    %62 = arith.addf %60, %61 : vector<8x32xf32>
    %63 = arith.negf %62 : vector<8x32xf32>
    %64 = math.exp %63 : vector<8x32xf32>
    %cst_22 = arith.constant 1.000000e+00 : f32
    %65 = vector.broadcast %cst_22 : f32 to vector<8x32xf32>
    %66 = arith.addf %65, %64 : vector<8x32xf32>
    %67 = arith.divf %65, %66 : vector<8x32xf32>
    %68 = vector.extract_strided_slice %49 {offsets = [0, 64], sizes = [8, 32], strides = [1, 1]} : vector<8x96xf32> to vector<8x32xf32>
    %69 = vector.extract_strided_slice %51 {offsets = [0, 64], sizes = [8, 32], strides = [1, 1]} : vector<8x96xf32> to vector<8x32xf32>
    %70 = arith.mulf %67, %69 : vector<8x32xf32>
    %71 = arith.addf %68, %70 : vector<8x32xf32>
    %72 = math.tanh %71 : vector<8x32xf32>
    %cst_23 = arith.constant 1.000000e+00 : f32
    %73 = vector.broadcast %cst_23 : f32 to vector<8x32xf32>
    %74 = arith.subf %73, %59 : vector<8x32xf32>
    %75 = arith.mulf %74, %72 : vector<8x32xf32>
    %76 = arith.mulf %59, %43 : vector<8x32xf32>
    %77 = arith.addf %75, %76 : vector<8x32xf32>
    %78 = arith.index_cast %47 : i32 to index
    %c0_24 = arith.constant 0 : index
    %79 = vector.load %arg10[%78, %c0_24] : memref<64x32xf32, #tpu.memory_space<vmem>>, vector<8x32xf32>
    tpu.vector_store %arg10[%78, %c0_24], %77 {strides = array<i32>} : memref<64x32xf32, #tpu.memory_space<vmem>>, vector<8x32xf32>,
    %c2_i32 = arith.constant 2 : i32
    %c8_i32_25 = arith.constant 8 : i32
    %80 = arith.muli %c2_i32, %c8_i32_25 : i32
    %81 = tpu.assume_multiple %80, 8 : i32
    %82 = arith.index_cast %81 : i32 to index
    %c0_26 = arith.constant 0 : index
    %83 = vector.load %arg9[%82, %c0_26] : memref<64x96xf32, #tpu.memory_space<vmem>>, vector<8x96xf32>
    %84 = arith.truncf %77 : vector<8x32xf32> to vector<8x32xbf16>
    %cst_27 = arith.constant dense<0.000000e+00> : vector<8x96xf32>
    %85 = tpu.matmul %84, %0, %cst_27 {dimension_numbers = #tpu.dot_dimension_numbers<[1], [0], [0], [1], [0, 0, 1, 1], [], []>} : vector<8x32xbf16>, vector<32x96xbf16>, vector<8x96xf32> -> vector<8x96xf32>
    %86 = vector.extract_strided_slice %83 {offsets = [0, 0], sizes = [8, 32], strides = [1, 1]} : vector<8x96xf32> to vector<8x32xf32>
    %87 = vector.extract_strided_slice %85 {offsets = [0, 0], sizes = [8, 32], strides = [1, 1]} : vector<8x96xf32> to vector<8x32xf32>
    %88 = arith.addf %86, %87 : vector<8x32xf32>
    %89 = arith.negf %88 : vector<8x32xf32>
    %90 = math.exp %89 : vector<8x32xf32>
    %cst_28 = arith.constant 1.000000e+00 : f32
    %91 = vector.broadcast %cst_28 : f32 to vector<8x32xf32>
    %92 = arith.addf %91, %90 : vector<8x32xf32>
    %93 = arith.divf %91, %92 : vector<8x32xf32>
    %94 = vector.extract_strided_slice %83 {offsets = [0, 32], sizes = [8, 32], strides = [1, 1]} : vector<8x96xf32> to vector<8x32xf32>
    %95 = vector.extract_strided_slice %85 {offsets = [0, 32], sizes = [8, 32], strides = [1, 1]} : vector<8x96xf32> to vector<8x32xf32>
    %96 = arith.addf %94, %95 : vector<8x32xf32>
    %97 = arith.negf %96 : vector<8x32xf32>
    %98 = math.exp %97 : vector<8x32xf32>
    %cst_29 = arith.constant 1.000000e+00 : f32
    %99 = vector.broadcast %cst_29 : f32 to vector<8x32xf32>
    %100 = arith.addf %99, %98 : vector<8x32xf32>
    %101 = arith.divf %99, %100 : vector<8x32xf32>
    %102 = vector.extract_strided_slice %83 {offsets = [0, 64], sizes = [8, 32], strides = [1, 1]} : vector<8x96xf32> to vector<8x32xf32>
    %103 = vector.extract_strided_slice %85 {offsets = [0, 64], sizes = [8, 32], strides = [1, 1]} : vector<8x96xf32> to vector<8x32xf32>
    %104 = arith.mulf %101, %103 : vector<8x32xf32>
    %105 = arith.addf %102, %104 : vector<8x32xf32>
    %106 = math.tanh %105 : vector<8x32xf32>
    %cst_30 = arith.constant 1.000000e+00 : f32
    %107 = vector.broadcast %cst_30 : f32 to vector<8x32xf32>
    %108 = arith.subf %107, %93 : vector<8x32xf32>
    %109 = arith.mulf %108, %106 : vector<8x32xf32>
    %110 = arith.mulf %93, %77 : vector<8x32xf32>
    %111 = arith.addf %109, %110 : vector<8x32xf32>
    %112 = arith.index_cast %81 : i32 to index
    %c0_31 = arith.constant 0 : index
    %113 = vector.load %arg10[%112, %c0_31] : memref<64x32xf32, #tpu.memory_space<vmem>>, vector<8x32xf32>
    tpu.vector_store %arg10[%112, %c0_31], %111 {strides = array<i32>} : memref<64x32xf32, #tpu.memory_space<vmem>>, vector<8x32xf32>,
    %c3_i32 = arith.constant 3 : i32
    %c8_i32_32 = arith.constant 8 : i32
    %114 = arith.muli %c3_i32, %c8_i32_32 : i32
    %115 = tpu.assume_multiple %114, 8 : i32
    %116 = arith.index_cast %115 : i32 to index
    %c0_33 = arith.constant 0 : index
    %117 = vector.load %arg9[%116, %c0_33] : memref<64x96xf32, #tpu.memory_space<vmem>>, vector<8x96xf32>
    %118 = arith.truncf %111 : vector<8x32xf32> to vector<8x32xbf16>
    %cst_34 = arith.constant dense<0.000000e+00> : vector<8x96xf32>
    %119 = tpu.matmul %118, %0, %cst_34 {dimension_numbers = #tpu.dot_dimension_numbers<[1], [0], [0], [1], [0, 0, 1, 1], [], []>} : vector<8x32xbf16>, vector<32x96xbf16>, vector<8x96xf32> -> vector<8x96xf32>
    %120 = vector.extract_strided_slice %117 {offsets = [0, 0], sizes = [8, 32], strides = [1, 1]} : vector<8x96xf32> to vector<8x32xf32>
    %121 = vector.extract_strided_slice %119 {offsets = [0, 0], sizes = [8, 32], strides = [1, 1]} : vector<8x96xf32> to vector<8x32xf32>
    %122 = arith.addf %120, %121 : vector<8x32xf32>
    %123 = arith.negf %122 : vector<8x32xf32>
    %124 = math.exp %123 : vector<8x32xf32>
    %cst_35 = arith.constant 1.000000e+00 : f32
    %125 = vector.broadcast %cst_35 : f32 to vector<8x32xf32>
    %126 = arith.addf %125, %124 : vector<8x32xf32>
    %127 = arith.divf %125, %126 : vector<8x32xf32>
    %128 = vector.extract_strided_slice %117 {offsets = [0, 32], sizes = [8, 32], strides = [1, 1]} : vector<8x96xf32> to vector<8x32xf32>
    %129 = vector.extract_strided_slice %119 {offsets = [0, 32], sizes = [8, 32], strides = [1, 1]} : vector<8x96xf32> to vector<8x32xf32>
    %130 = arith.addf %128, %129 : vector<8x32xf32>
    %131 = arith.negf %130 : vector<8x32xf32>
    %132 = math.exp %131 : vector<8x32xf32>
    %cst_36 = arith.constant 1.000000e+00 : f32
    %133 = vector.broadcast %cst_36 : f32 to vector<8x32xf32>
    %134 = arith.addf %133, %132 : vector<8x32xf32>
    %135 = arith.divf %133, %134 : vector<8x32xf32>
    %136 = vector.extract_strided_slice %117 {offsets = [0, 64], sizes = [8, 32], strides = [1, 1]} : vector<8x96xf32> to vector<8x32xf32>
    %137 = vector.extract_strided_slice %119 {offsets = [0, 64], sizes = [8, 32], strides = [1, 1]} : vector<8x96xf32> to vector<8x32xf32>
    %138 = arith.mulf %135, %137 : vector<8x32xf32>
    %139 = arith.addf %136, %138 : vector<8x32xf32>
    %140 = math.tanh %139 : vector<8x32xf32>
    %cst_37 = arith.constant 1.000000e+00 : f32
    %141 = vector.broadcast %cst_37 : f32 to vector<8x32xf32>
    %142 = arith.subf %141, %127 : vector<8x32xf32>
    %143 = arith.mulf %142, %140 : vector<8x32xf32>
    %144 = arith.mulf %127, %111 : vector<8x32xf32>
    %145 = arith.addf %143, %144 : vector<8x32xf32>
    %146 = arith.index_cast %115 : i32 to index
    %c0_38 = arith.constant 0 : index
    %147 = vector.load %arg10[%146, %c0_38] : memref<64x32xf32, #tpu.memory_space<vmem>>, vector<8x32xf32>
    tpu.vector_store %arg10[%146, %c0_38], %145 {strides = array<i32>} : memref<64x32xf32, #tpu.memory_space<vmem>>, vector<8x32xf32>,
    %c4_i32 = arith.constant 4 : i32
    %c8_i32_39 = arith.constant 8 : i32
    %148 = arith.muli %c4_i32, %c8_i32_39 : i32
    %149 = tpu.assume_multiple %148, 8 : i32
    %150 = arith.index_cast %149 : i32 to index
    %c0_40 = arith.constant 0 : index
    %151 = vector.load %arg9[%150, %c0_40] : memref<64x96xf32, #tpu.memory_space<vmem>>, vector<8x96xf32>
    %152 = arith.truncf %145 : vector<8x32xf32> to vector<8x32xbf16>
    %cst_41 = arith.constant dense<0.000000e+00> : vector<8x96xf32>
    %153 = tpu.matmul %152, %0, %cst_41 {dimension_numbers = #tpu.dot_dimension_numbers<[1], [0], [0], [1], [0, 0, 1, 1], [], []>} : vector<8x32xbf16>, vector<32x96xbf16>, vector<8x96xf32> -> vector<8x96xf32>
    %154 = vector.extract_strided_slice %151 {offsets = [0, 0], sizes = [8, 32], strides = [1, 1]} : vector<8x96xf32> to vector<8x32xf32>
    %155 = vector.extract_strided_slice %153 {offsets = [0, 0], sizes = [8, 32], strides = [1, 1]} : vector<8x96xf32> to vector<8x32xf32>
    %156 = arith.addf %154, %155 : vector<8x32xf32>
    %157 = arith.negf %156 : vector<8x32xf32>
    %158 = math.exp %157 : vector<8x32xf32>
    %cst_42 = arith.constant 1.000000e+00 : f32
    %159 = vector.broadcast %cst_42 : f32 to vector<8x32xf32>
    %160 = arith.addf %159, %158 : vector<8x32xf32>
    %161 = arith.divf %159, %160 : vector<8x32xf32>
    %162 = vector.extract_strided_slice %151 {offsets = [0, 32], sizes = [8, 32], strides = [1, 1]} : vector<8x96xf32> to vector<8x32xf32>
    %163 = vector.extract_strided_slice %153 {offsets = [0, 32], sizes = [8, 32], strides = [1, 1]} : vector<8x96xf32> to vector<8x32xf32>
    %164 = arith.addf %162, %163 : vector<8x32xf32>
    %165 = arith.negf %164 : vector<8x32xf32>
    %166 = math.exp %165 : vector<8x32xf32>
    %cst_43 = arith.constant 1.000000e+00 : f32
    %167 = vector.broadcast %cst_43 : f32 to vector<8x32xf32>
    %168 = arith.addf %167, %166 : vector<8x32xf32>
    %169 = arith.divf %167, %168 : vector<8x32xf32>
    %170 = vector.extract_strided_slice %151 {offsets = [0, 64], sizes = [8, 32], strides = [1, 1]} : vector<8x96xf32> to vector<8x32xf32>
    %171 = vector.extract_strided_slice %153 {offsets = [0, 64], sizes = [8, 32], strides = [1, 1]} : vector<8x96xf32> to vector<8x32xf32>
    %172 = arith.mulf %169, %171 : vector<8x32xf32>
    %173 = arith.addf %170, %172 : vector<8x32xf32>
    %174 = math.tanh %173 : vector<8x32xf32>
    %cst_44 = arith.constant 1.000000e+00 : f32
    %175 = vector.broadcast %cst_44 : f32 to vector<8x32xf32>
    %176 = arith.subf %175, %161 : vector<8x32xf32>
    %177 = arith.mulf %176, %174 : vector<8x32xf32>
    %178 = arith.mulf %161, %145 : vector<8x32xf32>
    %179 = arith.addf %177, %178 : vector<8x32xf32>
    %180 = arith.index_cast %149 : i32 to index
    %c0_45 = arith.constant 0 : index
    %181 = vector.load %arg10[%180, %c0_45] : memref<64x32xf32, #tpu.memory_space<vmem>>, vector<8x32xf32>
    tpu.vector_store %arg10[%180, %c0_45], %179 {strides = array<i32>} : memref<64x32xf32, #tpu.memory_space<vmem>>, vector<8x32xf32>,
    %c5_i32 = arith.constant 5 : i32
    %c8_i32_46 = arith.constant 8 : i32
    %182 = arith.muli %c5_i32, %c8_i32_46 : i32
    %183 = tpu.assume_multiple %182, 8 : i32
    %184 = arith.index_cast %183 : i32 to index
    %c0_47 = arith.constant 0 : index
    %185 = vector.load %arg9[%184, %c0_47] : memref<64x96xf32, #tpu.memory_space<vmem>>, vector<8x96xf32>
    %186 = arith.truncf %179 : vector<8x32xf32> to vector<8x32xbf16>
    %cst_48 = arith.constant dense<0.000000e+00> : vector<8x96xf32>
    %187 = tpu.matmul %186, %0, %cst_48 {dimension_numbers = #tpu.dot_dimension_numbers<[1], [0], [0], [1], [0, 0, 1, 1], [], []>} : vector<8x32xbf16>, vector<32x96xbf16>, vector<8x96xf32> -> vector<8x96xf32>
    %188 = vector.extract_strided_slice %185 {offsets = [0, 0], sizes = [8, 32], strides = [1, 1]} : vector<8x96xf32> to vector<8x32xf32>
    %189 = vector.extract_strided_slice %187 {offsets = [0, 0], sizes = [8, 32], strides = [1, 1]} : vector<8x96xf32> to vector<8x32xf32>
    %190 = arith.addf %188, %189 : vector<8x32xf32>
    %191 = arith.negf %190 : vector<8x32xf32>
    %192 = math.exp %191 : vector<8x32xf32>
    %cst_49 = arith.constant 1.000000e+00 : f32
    %193 = vector.broadcast %cst_49 : f32 to vector<8x32xf32>
    %194 = arith.addf %193, %192 : vector<8x32xf32>
    %195 = arith.divf %193, %194 : vector<8x32xf32>
    %196 = vector.extract_strided_slice %185 {offsets = [0, 32], sizes = [8, 32], strides = [1, 1]} : vector<8x96xf32> to vector<8x32xf32>
    %197 = vector.extract_strided_slice %187 {offsets = [0, 32], sizes = [8, 32], strides = [1, 1]} : vector<8x96xf32> to vector<8x32xf32>
    %198 = arith.addf %196, %197 : vector<8x32xf32>
    %199 = arith.negf %198 : vector<8x32xf32>
    %200 = math.exp %199 : vector<8x32xf32>
    %cst_50 = arith.constant 1.000000e+00 : f32
    %201 = vector.broadcast %cst_50 : f32 to vector<8x32xf32>
    %202 = arith.addf %201, %200 : vector<8x32xf32>
    %203 = arith.divf %201, %202 : vector<8x32xf32>
    %204 = vector.extract_strided_slice %185 {offsets = [0, 64], sizes = [8, 32], strides = [1, 1]} : vector<8x96xf32> to vector<8x32xf32>
    %205 = vector.extract_strided_slice %187 {offsets = [0, 64], sizes = [8, 32], strides = [1, 1]} : vector<8x96xf32> to vector<8x32xf32>
    %206 = arith.mulf %203, %205 : vector<8x32xf32>
    %207 = arith.addf %204, %206 : vector<8x32xf32>
    %208 = math.tanh %207 : vector<8x32xf32>
    %cst_51 = arith.constant 1.000000e+00 : f32
    %209 = vector.broadcast %cst_51 : f32 to vector<8x32xf32>
    %210 = arith.subf %209, %195 : vector<8x32xf32>
    %211 = arith.mulf %210, %208 : vector<8x32xf32>
    %212 = arith.mulf %195, %179 : vector<8x32xf32>
    %213 = arith.addf %211, %212 : vector<8x32xf32>
    %214 = arith.index_cast %183 : i32 to index
    %c0_52 = arith.constant 0 : index
    %215 = vector.load %arg10[%214, %c0_52] : memref<64x32xf32, #tpu.memory_space<vmem>>, vector<8x32xf32>
    tpu.vector_store %arg10[%214, %c0_52], %213 {strides = array<i32>} : memref<64x32xf32, #tpu.memory_space<vmem>>, vector<8x32xf32>,
    %c6_i32 = arith.constant 6 : i32
    %c8_i32_53 = arith.constant 8 : i32
    %216 = arith.muli %c6_i32, %c8_i32_53 : i32
    %217 = tpu.assume_multiple %216, 8 : i32
    %218 = arith.index_cast %217 : i32 to index
    %c0_54 = arith.constant 0 : index
    %219 = vector.load %arg9[%218, %c0_54] : memref<64x96xf32, #tpu.memory_space<vmem>>, vector<8x96xf32>
    %220 = arith.truncf %213 : vector<8x32xf32> to vector<8x32xbf16>
    %cst_55 = arith.constant dense<0.000000e+00> : vector<8x96xf32>
    %221 = tpu.matmul %220, %0, %cst_55 {dimension_numbers = #tpu.dot_dimension_numbers<[1], [0], [0], [1], [0, 0, 1, 1], [], []>} : vector<8x32xbf16>, vector<32x96xbf16>, vector<8x96xf32> -> vector<8x96xf32>
    %222 = vector.extract_strided_slice %219 {offsets = [0, 0], sizes = [8, 32], strides = [1, 1]} : vector<8x96xf32> to vector<8x32xf32>
    %223 = vector.extract_strided_slice %221 {offsets = [0, 0], sizes = [8, 32], strides = [1, 1]} : vector<8x96xf32> to vector<8x32xf32>
    %224 = arith.addf %222, %223 : vector<8x32xf32>
    %225 = arith.negf %224 : vector<8x32xf32>
    %226 = math.exp %225 : vector<8x32xf32>
    %cst_56 = arith.constant 1.000000e+00 : f32
    %227 = vector.broadcast %cst_56 : f32 to vector<8x32xf32>
    %228 = arith.addf %227, %226 : vector<8x32xf32>
    %229 = arith.divf %227, %228 : vector<8x32xf32>
    %230 = vector.extract_strided_slice %219 {offsets = [0, 32], sizes = [8, 32], strides = [1, 1]} : vector<8x96xf32> to vector<8x32xf32>
    %231 = vector.extract_strided_slice %221 {offsets = [0, 32], sizes = [8, 32], strides = [1, 1]} : vector<8x96xf32> to vector<8x32xf32>
    %232 = arith.addf %230, %231 : vector<8x32xf32>
    %233 = arith.negf %232 : vector<8x32xf32>
    %234 = math.exp %233 : vector<8x32xf32>
    %cst_57 = arith.constant 1.000000e+00 : f32
    %235 = vector.broadcast %cst_57 : f32 to vector<8x32xf32>
    %236 = arith.addf %235, %234 : vector<8x32xf32>
    %237 = arith.divf %235, %236 : vector<8x32xf32>
    %238 = vector.extract_strided_slice %219 {offsets = [0, 64], sizes = [8, 32], strides = [1, 1]} : vector<8x96xf32> to vector<8x32xf32>
    %239 = vector.extract_strided_slice %221 {offsets = [0, 64], sizes = [8, 32], strides = [1, 1]} : vector<8x96xf32> to vector<8x32xf32>
    %240 = arith.mulf %237, %239 : vector<8x32xf32>
    %241 = arith.addf %238, %240 : vector<8x32xf32>
    %242 = math.tanh %241 : vector<8x32xf32>
    %cst_58 = arith.constant 1.000000e+00 : f32
    %243 = vector.broadcast %cst_58 : f32 to vector<8x32xf32>
    %244 = arith.subf %243, %229 : vector<8x32xf32>
    %245 = arith.mulf %244, %242 : vector<8x32xf32>
    %246 = arith.mulf %229, %213 : vector<8x32xf32>
    %247 = arith.addf %245, %246 : vector<8x32xf32>
    %248 = arith.index_cast %217 : i32 to index
    %c0_59 = arith.constant 0 : index
    %249 = vector.load %arg10[%248, %c0_59] : memref<64x32xf32, #tpu.memory_space<vmem>>, vector<8x32xf32>
    tpu.vector_store %arg10[%248, %c0_59], %247 {strides = array<i32>} : memref<64x32xf32, #tpu.memory_space<vmem>>, vector<8x32xf32>,
    %c7_i32 = arith.constant 7 : i32
    %c8_i32_60 = arith.constant 8 : i32
    %250 = arith.muli %c7_i32, %c8_i32_60 : i32
    %251 = tpu.assume_multiple %250, 8 : i32
    %252 = arith.index_cast %251 : i32 to index
    %c0_61 = arith.constant 0 : index
    %253 = vector.load %arg9[%252, %c0_61] : memref<64x96xf32, #tpu.memory_space<vmem>>, vector<8x96xf32>
    %254 = arith.truncf %247 : vector<8x32xf32> to vector<8x32xbf16>
    %cst_62 = arith.constant dense<0.000000e+00> : vector<8x96xf32>
    %255 = tpu.matmul %254, %0, %cst_62 {dimension_numbers = #tpu.dot_dimension_numbers<[1], [0], [0], [1], [0, 0, 1, 1], [], []>} : vector<8x32xbf16>, vector<32x96xbf16>, vector<8x96xf32> -> vector<8x96xf32>
    %256 = vector.extract_strided_slice %253 {offsets = [0, 0], sizes = [8, 32], strides = [1, 1]} : vector<8x96xf32> to vector<8x32xf32>
    %257 = vector.extract_strided_slice %255 {offsets = [0, 0], sizes = [8, 32], strides = [1, 1]} : vector<8x96xf32> to vector<8x32xf32>
    %258 = arith.addf %256, %257 : vector<8x32xf32>
    %259 = arith.negf %258 : vector<8x32xf32>
    %260 = math.exp %259 : vector<8x32xf32>
    %cst_63 = arith.constant 1.000000e+00 : f32
    %261 = vector.broadcast %cst_63 : f32 to vector<8x32xf32>
    %262 = arith.addf %261, %260 : vector<8x32xf32>
    %263 = arith.divf %261, %262 : vector<8x32xf32>
    %264 = vector.extract_strided_slice %253 {offsets = [0, 32], sizes = [8, 32], strides = [1, 1]} : vector<8x96xf32> to vector<8x32xf32>
    %265 = vector.extract_strided_slice %255 {offsets = [0, 32], sizes = [8, 32], strides = [1, 1]} : vector<8x96xf32> to vector<8x32xf32>
    %266 = arith.addf %264, %265 : vector<8x32xf32>
    %267 = arith.negf %266 : vector<8x32xf32>
    %268 = math.exp %267 : vector<8x32xf32>
    %cst_64 = arith.constant 1.000000e+00 : f32
    %269 = vector.broadcast %cst_64 : f32 to vector<8x32xf32>
    %270 = arith.addf %269, %268 : vector<8x32xf32>
    %271 = arith.divf %269, %270 : vector<8x32xf32>
    %272 = vector.extract_strided_slice %253 {offsets = [0, 64], sizes = [8, 32], strides = [1, 1]} : vector<8x96xf32> to vector<8x32xf32>
    %273 = vector.extract_strided_slice %255 {offsets = [0, 64], sizes = [8, 32], strides = [1, 1]} : vector<8x96xf32> to vector<8x32xf32>
    %274 = arith.mulf %271, %273 : vector<8x32xf32>
    %275 = arith.addf %272, %274 : vector<8x32xf32>
    %276 = math.tanh %275 : vector<8x32xf32>
    %cst_65 = arith.constant 1.000000e+00 : f32
    %277 = vector.broadcast %cst_65 : f32 to vector<8x32xf32>
    %278 = arith.subf %277, %263 : vector<8x32xf32>
    %279 = arith.mulf %278, %276 : vector<8x32xf32>
    %280 = arith.mulf %263, %247 : vector<8x32xf32>
    %281 = arith.addf %279, %280 : vector<8x32xf32>
    %282 = arith.index_cast %251 : i32 to index
    %c0_66 = arith.constant 0 : index
    %283 = vector.load %arg10[%282, %c0_66] : memref<64x32xf32, #tpu.memory_space<vmem>>, vector<8x32xf32>
    tpu.vector_store %arg10[%282, %c0_66], %281 {strides = array<i32>} : memref<64x32xf32, #tpu.memory_space<vmem>>, vector<8x32xf32>,
    %c8_i32_67 = arith.constant 8 : i32
    %c0_68 = arith.constant 0 : index
    %c0_69 = arith.constant 0 : index
    %284 = vector.load %arg10[%c0_68, %c0_69] : memref<64x32xf32, #tpu.memory_space<vmem>>, vector<64x32xf32>
    %285 = arith.truncf %284 : vector<64x32xf32> to vector<64x32xbf16>
    %c0_70 = arith.constant 0 : index
    %c0_71 = arith.constant 0 : index
    %286 = vector.load %arg6[%c0_70, %c0_71] : memref<32x128xbf16, #tpu.memory_space<vmem>>, vector<32x128xbf16>
    %cst_72 = arith.constant dense<0.000000e+00> : vector<64x128xf32>
    %287 = tpu.matmul %285, %286, %cst_72 {dimension_numbers = #tpu.dot_dimension_numbers<[1], [0], [0], [1], [0, 0, 1, 1], [], []>} : vector<64x32xbf16>, vector<32x128xbf16>, vector<64x128xf32> -> vector<64x128xf32>
    %c0_73 = arith.constant 0 : index
    %c0_74 = arith.constant 0 : index
    %288 = vector.load %arg7[%c0_73, %c0_74] : memref<1x128xf32, #tpu.memory_space<vmem>>, vector<1x128xf32>
    %289 = vector.broadcast %288 : vector<1x128xf32> to vector<64x128xf32>
    %290 = arith.addf %287, %289 : vector<64x128xf32>
    %cst_75 = arith.constant dense<0xFF800000> : vector<64xf32>
    %291 = vector.multi_reduction <maximumf>, %290, %cst_75 [1] : vector<64x128xf32> to vector<64xf32>
    %292 = vector.shape_cast %291 : vector<64xf32> to vector<64x1xf32>
    %293 = vector.broadcast %292 : vector<64x1xf32> to vector<64x128xf32>
    %294 = arith.subf %290, %293 : vector<64x128xf32>
    %295 = math.exp %294 : vector<64x128xf32>
    %cst_76 = arith.constant dense<0.000000e+00> : vector<64xf32>
    %296 = vector.multi_reduction <add>, %295, %cst_76 [1] : vector<64x128xf32> to vector<64xf32>
    %297 = vector.shape_cast %296 : vector<64xf32> to vector<64x1xf32>
    %298 = math.log %297 : vector<64x1xf32>
    %299 = arith.addf %292, %298 : vector<64x1xf32>
    %300 = tpu.iota {dimensions = array<i32: 1>} : vector<64x128xi32>
    %c0_77 = arith.constant 0 : index
    %c0_78 = arith.constant 0 : index
    %301 = vector.load %arg1[%c0_77, %c0_78] : memref<64x1xi32, #tpu.memory_space<vmem>>, vector<64x1xi32>
    %302 = vector.broadcast %301 : vector<64x1xi32> to vector<64x128xi32>
    %303 = arith.cmpi eq, %300, %302 : vector<64x128xi32>
    %cst_79 = arith.constant 0.000000e+00 : f32
    %304 = vector.broadcast %cst_79 : f32 to vector<64x128xf32>
    %305 = arith.select %303, %290, %304 : vector<64x128xi1>, vector<64x128xf32>
    %cst_80 = arith.constant dense<0.000000e+00> : vector<64xf32>
    %306 = vector.multi_reduction <add>, %305, %cst_80 [1] : vector<64x128xf32> to vector<64xf32>
    %307 = vector.shape_cast %306 : vector<64xf32> to vector<64x1xf32>
    %308 = arith.subf %299, %307 : vector<64x1xf32>
    %309 = vector.shape_cast %308 : vector<64x1xf32> to vector<1x64x1xf32>
    %cst_81 = arith.constant dense<0.000000e+00> : vector<1xf32>
    %310 = vector.multi_reduction <add>, %309, %cst_81 [1, 2] : vector<1x64x1xf32> to vector<1xf32>
    %311 = vector.shape_cast %310 : vector<1xf32> to vector<1x1x1xf32>
    %312 = vector.extract %311[0, 0, 0] : f32 from vector<1x1x1xf32>
    %313 = vector.broadcast %312 : f32 to vector<1x1xf32>
    %c0_82 = arith.constant 0 : index
    %c0_83 = arith.constant 0 : index
    %314 = vector.load %arg8[%c0_82, %c0_83] : memref<1x1xf32, #tpu.memory_space<vmem>>, vector<1x1xf32>
    tpu.vector_store %arg8[%c0_82, %c0_83], %313 {strides = array<i32>} : memref<1x1xf32, #tpu.memory_space<vmem>>, vector<1x1xf32>,
    return
  }
}

</mosaic_0001>

<llo_original>
// kernel: doggen_forward.1
$region0: #{doggen_forward.1}
  #allocation0 [shape = 'u32[]', space=smem, size = 0x4, offset = 0x4, fixed_abs, tag = 'smem constant byte address 0x4 - core index']
  #allocation1 [shape = 'u32[144,128]{1,0:T(1,128)}', space=vmem, size = 0x12000, scoped, tag = 'internal scratch']
  #allocation2 [shape = 'f32[64,96]{1,0:T(8,128)}', space=vmem, size = 0x8000, scoped, tag = 'scratch operand']
  #allocation3 [shape = 'f32[64,32]{1,0:T(8,128)}', space=vmem, size = 0x8000, scoped, tag = 'scratch operand']
  %s0 = inlined_call_operand.vmem [shape: bf16[64,16], index: 0, kind: input, shape index: {}]
  %s1 = inlined_call_operand.vmem [shape: s32[64,1], index: 1, kind: input, shape index: {}]
  %s2 = inlined_call_operand.vmem [shape: f32[1,32], index: 2, kind: input, shape index: {}]
  %s3 = inlined_call_operand.vmem [shape: bf16[16,96], index: 3, kind: input, shape index: {}]
  %s4 = inlined_call_operand.vmem [shape: f32[1,96], index: 4, kind: input, shape index: {}]
  %s5 = inlined_call_operand.vmem [shape: bf16[32,96], index: 5, kind: input, shape index: {}]
  %s6 = inlined_call_operand.vmem [shape: bf16[32,128], index: 6, kind: input, shape index: {}]
  %s7 = inlined_call_operand.vmem [shape: f32[1,128], index: 7, kind: input, shape index: {}]
  %s8 = inlined_call_operand.hbm [shape: f32[1,1], index: 8, kind: output, shape index: {}]
  %s9 = sld [smem:[#allocation0]]
  $region42: #{doggen_forward.1} parent=0
    _
  %s11 = ssub.s32 1, %s9
  %s12 = scalar_select 0, %s11, %s9
  $region1: #{doggen_forward.1} parent=0
    #allocation4 [shape = 'u8[512]{0}', space=vmem, size = 0x400, scoped, tag = 'output window, operand 0, single buffered']
    #allocation5 [shape = 's32[1]{0}', space=sflag, size = 0x4, scoped, tag = 'scoped memory for doggen_forward.1']
    %13 = vsyncpa [#allocation5], 0
    // Predicated region
    $region2: #{doggen_forward.1} parent=1 // pred_check
      _
    $region3: #{doggen_forward.1} parent=1 // pred_check_branch
      %15 = sbr.rel (0) target = $region5
    $region4: #{doggen_forward.1} parent=1 // pred_region
      _
    $region5: #{doggen_forward.1} parent=1 // pred_fallthru
      _
    // Predicated region
    $region6: #{doggen_forward.1} parent=1 // pred_check
      _
    $region7: #{doggen_forward.1} parent=1 // pred_check_branch
      %17 = sbr.rel (0) target = $region9
    $region8: #{doggen_forward.1} parent=1 // pred_region
      _
    $region9: #{doggen_forward.1} parent=1 // pred_fallthru
      _
    // Predicated region
    $region10: #{doggen_forward.1} parent=1 // pred_check
      _
    $region11: #{doggen_forward.1} parent=1 // pred_check_branch
      %19 = sbr.rel (0) target = $region13
    $region12: #{doggen_forward.1} parent=1 // pred_region
      _
    $region13: #{doggen_forward.1} parent=1 // pred_fallthru
      _
    // Predicated region
    $region14: #{doggen_forward.1} parent=1 // pred_check
      _
    $region15: #{doggen_forward.1} parent=1 // pred_check_branch
      %21 = sbr.rel (0) target = $region17
    $region16: #{doggen_forward.1} parent=1 // pred_region
      _
    $region17: #{doggen_forward.1} parent=1 // pred_fallthru
      _
    // Predicated region
    $region18: #{doggen_forward.1} parent=1 // pred_check
      _
    $region19: #{doggen_forward.1} parent=1 // pred_check_branch
      %23 = sbr.rel (0) target = $region21
    $region20: #{doggen_forward.1} parent=1 // pred_region
      _
    $region21: #{doggen_forward.1} parent=1 // pred_fallthru
      _
    // Predicated region
    $region22: #{doggen_forward.1} parent=1 // pred_check
      _
    $region23: #{doggen_forward.1} parent=1 // pred_check_branch
      %25 = sbr.rel (0) target = $region25
    $region24: #{doggen_forward.1} parent=1 // pred_region
      _
    $region25: #{doggen_forward.1} parent=1 // pred_fallthru
      _
    // Predicated region
    $region26: #{doggen_forward.1} parent=1 // pred_check
      _
    $region27: #{doggen_forward.1} parent=1 // pred_check_branch
      %27 = sbr.rel (0) target = $region29
    $region28: #{doggen_forward.1} parent=1 // pred_region
      _
    $region29: #{doggen_forward.1} parent=1 // pred_fallthru
      _
    // Predicated region
    $region30: #{doggen_forward.1} parent=1 // pred_check
      _
    $region31: #{doggen_forward.1} parent=1 // pred_check_branch
      %29 = sbr.rel (0) target = $region33
    $region32: #{doggen_forward.1} parent=1 // pred_region
      _
    $region33: #{doggen_forward.1} parent=1 // pred_fallthru
      _
    %v31 = vld [vmem:[%s5] sm:$0xf]
    %v32 = vld [vmem:[%s5 + $0x4] sm:$0xf]
    %v33 = vld [vmem:[%s5 + $0x8] sm:$0xf]
    %v34 = vld [vmem:[%s5 + $0xc] sm:$0xf]
    %v35 = vld [vmem:[%s0] sm:$0xf]
    %v36 = vld [vmem:[%s0 + $0x4] sm:$0xf]
    %v37 = vld [vmem:[%s0 + $0x8] sm:$0xf]
    %v38 = vld [vmem:[%s0 + $0xc] sm:$0xf]
    %v39 = vld [vmem:[%s0 + $0x10] sm:$0xf]
    %v40 = vld [vmem:[%s0 + $0x14] sm:$0xf]
    %v41 = vld [vmem:[%s0 + $0x18] sm:$0xf]
    %v42 = vld [vmem:[%s0 + $0x1c] sm:$0xf]
    %v43 = vld [vmem:[%s3] sm:$0xf]
    %v44 = vld [vmem:[%s3 + $0x4] sm:$0xf]
    %v45 = vld [vmem:[%s4] sm:$0x1]
    %v47 = vlaneseq
    %v48 = vshrl.u32 %v47, 7
    %v49 = vsub.s32 0, %v48
    %v50 = vrot.slane %v45, %v49
    %v60 = vunpack.c.l.b16 %v35
    %v61 = vunpack.c.l.b16 %v36
    %v62 = vunpack.c.l.b16 %v37
    %v63 = vunpack.c.l.b16 %v38
    %v64 = vunpack.c.l.b16 %v39
    %v65 = vunpack.c.l.b16 %v40
    %v66 = vunpack.c.l.b16 %v41
    %v67 = vunpack.c.l.b16 %v42
    %v68 = vpack.c.b16 %v61, %v60
    %v69 = vpack.c.b16 %v63, %v62
    %v70 = vpack.c.b16 %v65, %v64
    %v71 = vpack.c.b16 %v67, %v66
    %v74 = vunpack.c.l.b16 %v43
    %v75 = vunpack.c.l.b16 %v44
    %v76 = vpack.c.b16 %v75, %v74
    %vm78 = vcmask 130048
    %v80 = vsel %vm78, %v68, 0
    %v83 = vsel %vm78, %v69, 0
    %v86 = vsel %vm78, %v70, 0
    %v89 = vsel %vm78, %v71, 0
    %91 = vmatprep.subr.bf16.mxu0 0
    %92 = vmatpush1.bf16.msra.mxu0 %v76
    %93 = vmatprep.subr.bf16.mxu0 0
    %94 = vmatpush1.bf16.msra.mxu0 0
    %95 = vmatprep.subr.bf16.mxu0 0
    %96 = vmatpush1.bf16.msra.mxu0 0
    %97 = vmatprep.subr.bf16.mxu0 0
    %98 = vmatpush1.bf16.msra.mxu0 0
    %99 = vmatprep.subr.bf16.mxu0 0
    %100 = vmatpush1.bf16.msra.mxu0 0
    %101 = vmatprep.subr.bf16.mxu0 0
    %102 = vmatpush1.bf16.msra.mxu0 0
    %103 = vmatprep.subr.bf16.mxu0 0
    %104 = vmatpush1.bf16.msra.mxu0 0
    %105 = vmatprep.subr.bf16.mxu0 0
    %106 = vmatpush1.bf16.msra.mxu0 0
    %107 = vmatprep.subr.bf16.mxu0 0
    %108 = vmatpush1.bf16.msra.mxu0 0
    %109 = vmatprep.subr.bf16.mxu0 0
    %110 = vmatpush1.bf16.msra.mxu0 0
    %111 = vmatprep.subr.bf16.mxu0 0
    %112 = vmatpush1.bf16.msra.mxu0 0
    %113 = vmatprep.subr.bf16.mxu0 0
    %114 = vmatpush1.bf16.msra.mxu0 0
    %115 = vmatprep.subr.bf16.mxu0 0
    %116 = vmatpush1.bf16.msra.mxu0 0
    %117 = vmatprep.subr.bf16.mxu0 0
    %118 = vmatpush1.bf16.msra.mxu0 0
    %119 = vmatprep.subr.bf16.mxu0 0
    %120 = vmatpush1.bf16.msra.mxu0 0
    %121 = vmatprep.subr.bf16.mxu0 0
    %122 = vmatpush1.bf16.msra.mxu0 0
    %123 = vmatprep.mubr.bf16.mxu0 0
    %124 = vmatmul.mubr.bf16.gmra.mrb[0].mxu0 %v80
    %v125 = vpop.f32.mrb[0].mxu0
    %v126 = vadd.f32 %v50, %v125
    %v127 = vpop.f32.mrb[0].mxu0
    %v128 = vpop.f32.mrb[0].mxu0
    %v129 = vadd.f32 %v50, %v128
    %v130 = vpop.f32.mrb[0].mxu0
    %131 = vmatprep.mubr.bf16.mxu0 0
    %132 = vmatmul.mubr.bf16.gmra.mrb[0].mxu0 %v83
    %v133 = vpop.f32.mrb[0].mxu0
    %v134 = vadd.f32 %v50, %v133
    %v135 = vpop.f32.mrb[0].mxu0
    %v136 = vpop.f32.mrb[0].mxu0
    %v137 = vadd.f32 %v50, %v136
    %v138 = vpop.f32.mrb[0].mxu0
    %139 = vmatprep.mubr.bf16.mxu0 0
    %140 = vmatmul.mubr.bf16.gmra.mrb[0].mxu0 %v86
    %v141 = vpop.f32.mrb[0].mxu0
    %v142 = vadd.f32 %v50, %v141
    %v143 = vpop.f32.mrb[0].mxu0
    %v144 = vpop.f32.mrb[0].mxu0
    %v145 = vadd.f32 %v50, %v144
    %v146 = vpop.f32.mrb[0].mxu0
    %147 = vmatprep.mubr.bf16.mxu0 0
    %148 = vmatmul.mubr.bf16.gmra.mrb[0].mxu0 %v89
    %v149 = vpop.f32.mrb[0].mxu0
    %v150 = vadd.f32 %v50, %v149
    %v151 = vpop.f32.mrb[0].mxu0
    %v152 = vpop.f32.mrb[0].mxu0
    %v153 = vadd.f32 %v50, %v152
    %v154 = vpop.f32.mrb[0].mxu0
    %155 = vdwg.mxu0
    %vm156 = vcmask 785408
    %157 = vst.msk [vmem:[#allocation2] sm:$0xff] %vm156, %v126
    %158 = vst.msk [vmem:[#allocation2 + $0x8] sm:$0xff] %vm156, %v129
    %159 = vst.msk [vmem:[#allocation2 + $0x10] sm:$0xff] %vm156, %v134
    %160 = vst.msk [vmem:[#allocation2 + $0x18] sm:$0xff] %vm156, %v137
    %161 = vst.msk [vmem:[#allocation2 + $0x20] sm:$0xff] %vm156, %v142
    %162 = vst.msk [vmem:[#allocation2 + $0x28] sm:$0xff] %vm156, %v145
    %163 = vst.msk [vmem:[#allocation2 + $0x30] sm:$0xff] %vm156, %v150
    %164 = vst.msk [vmem:[#allocation2 + $0x38] sm:$0xff] %vm156, %v153
    %v165 = vld [vmem:[%s2] sm:$0x1]
    %v167 = vlaneseq
    %v168 = vshrl.u32 %v167, 7
    %v169 = vsub.s32 0, %v168
    %v170 = vrot.slane %v165, %v169
    %v172 = vadd.f32 %v170, 0.0
    %v173 = vld [vmem:[#allocation2] sm:$0xff]
    %v174 = vpack.c.bf16 %v172, %v172
    %v179 = vunpack.c.l.b16 %v31
    %v180 = vunpack.c.l.b16 %v32
    %v181 = vunpack.c.l.b16 %v33
    %v182 = vunpack.c.l.b16 %v34
    %v183 = vpack.c.b16 %v180, %v179
    %v184 = vpack.c.b16 %v182, %v181
    %vm187 = vcmask 261120
    %v189 = vsel %vm187, %v174, 0
    %191 = vmatprep.subr.bf16.mxu0 0
    %192 = vmatpush1.bf16.msra.mxu0 %v183
    %193 = vmatprep.subr.bf16.mxu0 0
    %194 = vmatpush1.bf16.msra.mxu0 %v184
    %195 = vmatprep.subr.bf16.mxu0 0
    %196 = vmatpush1.bf16.msra.mxu0 0
    %197 = vmatprep.subr.bf16.mxu0 0
    %198 = vmatpush1.bf16.msra.mxu0 0
    %199 = vmatprep.subr.bf16.mxu0 0
    %200 = vmatpush1.bf16.msra.mxu0 0
    %201 = vmatprep.subr.bf16.mxu0 0
    %202 = vmatpush1.bf16.msra.mxu0 0
    %203 = vmatprep.subr.bf16.mxu0 0
    %204 = vmatpush1.bf16.msra.mxu0 0
    %205 = vmatprep.subr.bf16.mxu0 0
    %206 = vmatpush1.bf16.msra.mxu0 0
    %207 = vmatprep.subr.bf16.mxu0 0
    %208 = vmatpush1.bf16.msra.mxu0 0
    %209 = vmatprep.subr.bf16.mxu0 0
    %210 = vmatpush1.bf16.msra.mxu0 0
    %211 = vmatprep.subr.bf16.mxu0 0
    %212 = vmatpush1.bf16.msra.mxu0 0
    %213 = vmatprep.subr.bf16.mxu0 0
    %214 = vmatpush1.bf16.msra.mxu0 0
    %215 = vmatprep.subr.bf16.mxu0 0
    %216 = vmatpush1.bf16.msra.mxu0 0
    %217 = vmatprep.subr.bf16.mxu0 0
    %218 = vmatpush1.bf16.msra.mxu0 0
    %219 = vmatprep.subr.bf16.mxu0 0
    %220 = vmatpush1.bf16.msra.mxu0 0
    %221 = vmatprep.subr.bf16.mxu0 0
    %222 = vmatpush1.bf16.msra.mxu0 0
    %223 = vmatprep.mubr.bf16.mxu0 0
    %224 = vmatmul.mubr.bf16.gmra.mrb[0].mxu0 %v189
    %v225 = vpop.f32.mrb[0].mxu0
    %v226 = vadd.f32 0.0, %v225
    %v227 = vpop.f32.mrb[0].mxu0
    %v228 = vpop.f32.mrb[0].mxu0
    %v229 = vpop.f32.mrb[0].mxu0
    %230 = vdwg.mxu0
    %v231 = vadd.f32 %v173, %v226
    %v232 = vxor.u32 %v231, 2147483648
    %v233 = vmul.f32 %v232, 1.442695
    %v234 = vpow.pop %v233
    %v235 = vadd.f32 %v234, 1.0
    %v236 = vrcp.pop %v235
    %v237 = vmul.f32 1.0, %v236
    %239 = vrot.lane.b32.xlu0 %v226, 96
    %v240 = vpop.permute.xlu0 %239
    %v242 = vmul.f32 %v237, %v240
    %244 = vrot.lane.b32.xlu0 %v242, 32
    %v245 = vpop.permute.xlu0 %244
    %v247 = vadd.f32 %v173, %v245
    %v248 = vtanh.pop %v247
    %v249 = vsub.f32 1.0, %v237
    %251 = vrot.lane.b32.xlu0 %v248, 64
    %v252 = vpop.permute.xlu0 %251
    %v254 = vmul.f32 %v249, %v252
    %v255 = vmul.f32 %v237, %v172
    %v256 = vadd.f32 %v254, %v255
    %257 = vst.msk [vmem:[#allocation3] sm:$0xff] %vm187, %v256
    %s258 = scalar_lea.vmem [#allocation2], 8
    %v259 = vld [vmem:[%s258] sm:$0xff]
    %v260 = vpack.c.bf16 %v256, %v256
    %v262 = vsel %vm187, %v260, 0
    %264 = vmatprep.subr.bf16.mxu0 0
    %265 = vmatpush1.bf16.msra.mxu0 %v183
    %266 = vmatprep.subr.bf16.mxu0 0
    %267 = vmatpush1.bf16.msra.mxu0 %v184
    %268 = vmatprep.subr.bf16.mxu0 0
    %269 = vmatpush1.bf16.msra.mxu0 0
    %270 = vmatprep.subr.bf16.mxu0 0
    %271 = vmatpush1.bf16.msra.mxu0 0
    %272 = vmatprep.subr.bf16.mxu0 0
    %273 = vmatpush1.bf16.msra.mxu0 0
    %274 = vmatprep.subr.bf16.mxu0 0
    %275 = vmatpush1.bf16.msra.mxu0 0
    %276 = vmatprep.subr.bf16.mxu0 0
    %277 = vmatpush1.bf16.msra.mxu0 0
    %278 = vmatprep.subr.bf16.mxu0 0
    %279 = vmatpush1.bf16.msra.mxu0 0
    %280 = vmatprep.subr.bf16.mxu0 0
    %281 = vmatpush1.bf16.msra.mxu0 0
    %282 = vmatprep.subr.bf16.mxu0 0
    %283 = vmatpush1.bf16.msra.mxu0 0
    %284 = vmatprep.subr.bf16.mxu0 0
    %285 = vmatpush1.bf16.msra.mxu0 0
    %286 = vmatprep.subr.bf16.mxu0 0
    %287 = vmatpush1.bf16.msra.mxu0 0
    %288 = vmatprep.subr.bf16.mxu0 0
    %289 = vmatpush1.bf16.msra.mxu0 0
    %290 = vmatprep.subr.bf16.mxu0 0
    %291 = vmatpush1.bf16.msra.mxu0 0
    %292 = vmatprep.subr.bf16.mxu0 0
    %293 = vmatpush1.bf16.msra.mxu0 0
    %294 = vmatprep.subr.bf16.mxu0 0
    %295 = vmatpush1.bf16.msra.mxu0 0
    %296 = vmatprep.mubr.bf16.mxu0 0
    %297 = vmatmul.mubr.bf16.gmra.mrb[0].mxu0 %v262
    %v298 = vpop.f32.mrb[0].mxu0
    %v299 = vadd.f32 0.0, %v298
    %v300 = vpop.f32.mrb[0].mxu0
    %v301 = vpop.f32.mrb[0].mxu0
    %v302 = vpop.f32.mrb[0].mxu0
    %303 = vdwg.mxu0
    %v304 = vadd.f32 %v259, %v299
    %v305 = vxor.u32 %v304, 2147483648
    %v306 = vmul.f32 %v305, 1.442695
    %v307 = vpow.pop %v306
    %v308 = vadd.f32 %v307, 1.0
    %v309 = vrcp.pop %v308
    %v310 = vmul.f32 1.0, %v309
    %312 = vrot.lane.b32.xlu0 %v299, 96
    %v313 = vpop.permute.xlu0 %312
    %v315 = vmul.f32 %v310, %v313
    %317 = vrot.lane.b32.xlu0 %v315, 32
    %v318 = vpop.permute.xlu0 %317
    %v320 = vadd.f32 %v259, %v318
    %v321 = vtanh.pop %v320
    %v322 = vsub.f32 1.0, %v310
    %324 = vrot.lane.b32.xlu0 %v321, 64
    %v325 = vpop.permute.xlu0 %324
    %v327 = vmul.f32 %v322, %v325
    %v328 = vmul.f32 %v310, %v256
    %v329 = vadd.f32 %v327, %v328
    %s330 = scalar_lea.vmem [#allocation3], 8
    %331 = vst.msk [vmem:[%s330] sm:$0xff] %vm187, %v329
    %s332 = scalar_lea.vmem [#allocation2], 16
    %v333 = vld [vmem:[%s332] sm:$0xff]
    %v334 = vpack.c.bf16 %v329, %v329
    %v336 = vsel %vm187, %v334, 0
    %338 = vmatprep.subr.bf16.mxu0 0
    %339 = vmatpush1.bf16.msra.mxu0 %v183
    %340 = vmatprep.subr.bf16.mxu0 0
    %341 = vmatpush1.bf16.msra.mxu0 %v184
    %342 = vmatprep.subr.bf16.mxu0 0
    %343 = vmatpush1.bf16.msra.mxu0 0
    %344 = vmatprep.subr.bf16.mxu0 0
    %345 = vmatpush1.bf16.msra.mxu0 0
    %346 = vmatprep.subr.bf16.mxu0 0
    %347 = vmatpush1.bf16.msra.mxu0 0
    %348 = vmatprep.subr.bf16.mxu0 0
    %349 = vmatpush1.bf16.msra.mxu0 0
    %350 = vmatprep.subr.bf16.mxu0 0
    %351 = vmatpush1.bf16.msra.mxu0 0
    %352 = vmatprep.subr.bf16.mxu0 0
    %353 = vmatpush1.bf16.msra.mxu0 0
    %354 = vmatprep.subr.bf16.mxu0 0
    %355 = vmatpush1.bf16.msra.mxu0 0
    %356 = vmatprep.subr.bf16.mxu0 0
    %357 = vmatpush1.bf16.msra.mxu0 0
    %358 = vmatprep.subr.bf16.mxu0 0
    %359 = vmatpush1.bf16.msra.mxu0 0
    %360 = vmatprep.subr.bf16.mxu0 0
    %361 = vmatpush1.bf16.msra.mxu0 0
    %362 = vmatprep.subr.bf16.mxu0 0
    %363 = vmatpush1.bf16.msra.mxu0 0
    %364 = vmatprep.subr.bf16.mxu0 0
    %365 = vmatpush1.bf16.msra.mxu0 0
    %366 = vmatprep.subr.bf16.mxu0 0
    %367 = vmatpush1.bf16.msra.mxu0 0
    %368 = vmatprep.subr.bf16.mxu0 0
    %369 = vmatpush1.bf16.msra.mxu0 0
    %370 = vmatprep.mubr.bf16.mxu0 0
    %371 = vmatmul.mubr.bf16.gmra.mrb[0].mxu0 %v336
    %v372 = vpop.f32.mrb[0].mxu0
    %v373 = vadd.f32 0.0, %v372
    %v374 = vpop.f32.mrb[0].mxu0
    %v375 = vpop.f32.mrb[0].mxu0
    %v376 = vpop.f32.mrb[0].mxu0
    %377 = vdwg.mxu0
    %v378 = vadd.f32 %v333, %v373
    %v379 = vxor.u32 %v378, 2147483648
    %v380 = vmul.f32 %v379, 1.442695
    %v381 = vpow.pop %v380
    %v382 = vadd.f32 %v381, 1.0
    %v383 = vrcp.pop %v382
    %v384 = vmul.f32 1.0, %v383
    %386 = vrot.lane.b32.xlu0 %v373, 96
    %v387 = vpop.permute.xlu0 %386
    %v389 = vmul.f32 %v384, %v387
    %391 = vrot.lane.b32.xlu0 %v389, 32
    %v392 = vpop.permute.xlu0 %391
    %v394 = vadd.f32 %v333, %v392
    %v395 = vtanh.pop %v394
    %v396 = vsub.f32 1.0, %v384
    %398 = vrot.lane.b32.xlu0 %v395, 64
    %v399 = vpop.permute.xlu0 %398
    %v401 = vmul.f32 %v396, %v399
    %v402 = vmul.f32 %v384, %v329
    %v403 = vadd.f32 %v401, %v402
    %s404 = scalar_lea.vmem [#allocation3], 16
    %405 = vst.msk [vmem:[%s404] sm:$0xff] %vm187, %v403
    %s406 = scalar_lea.vmem [#allocation2], 24
    %v407 = vld [vmem:[%s406] sm:$0xff]
    %v408 = vpack.c.bf16 %v403, %v403
    %v410 = vsel %vm187, %v408, 0
    %412 = vmatprep.subr.bf16.mxu0 0
    %413 = vmatpush1.bf16.msra.mxu0 %v183
    %414 = vmatprep.subr.bf16.mxu0 0
    %415 = vmatpush1.bf16.msra.mxu0 %v184
    %416 = vmatprep.subr.bf16.mxu0 0
    %417 = vmatpush1.bf16.msra.mxu0 0
    %418 = vmatprep.subr.bf16.mxu0 0
    %419 = vmatpush1.bf16.msra.mxu0 0
    %420 = vmatprep.subr.bf16.mxu0 0
    %421 = vmatpush1.bf16.msra.mxu0 0
    %422 = vmatprep.subr.bf16.mxu0 0
    %423 = vmatpush1.bf16.msra.mxu0 0
    %424 = vmatprep.subr.bf16.mxu0 0
    %425 = vmatpush1.bf16.msra.mxu0 0
    %426 = vmatprep.subr.bf16.mxu0 0
    %427 = vmatpush1.bf16.msra.mxu0 0
    %428 = vmatprep.subr.bf16.mxu0 0
    %429 = vmatpush1.bf16.msra.mxu0 0
    %430 = vmatprep.subr.bf16.mxu0 0
    %431 = vmatpush1.bf16.msra.mxu0 0
    %432 = vmatprep.subr.bf16.mxu0 0
    %433 = vmatpush1.bf16.msra.mxu0 0
    %434 = vmatprep.subr.bf16.mxu0 0
    %435 = vmatpush1.bf16.msra.mxu0 0
    %436 = vmatprep.subr.bf16.mxu0 0
    %437 = vmatpush1.bf16.msra.mxu0 0
    %438 = vmatprep.subr.bf16.mxu0 0
    %439 = vmatpush1.bf16.msra.mxu0 0
    %440 = vmatprep.subr.bf16.mxu0 0
    %441 = vmatpush1.bf16.msra.mxu0 0
    %442 = vmatprep.subr.bf16.mxu0 0
    %443 = vmatpush1.bf16.msra.mxu0 0
    %444 = vmatprep.mubr.bf16.mxu0 0
    %445 = vmatmul.mubr.bf16.gmra.mrb[0].mxu0 %v410
    %v446 = vpop.f32.mrb[0].mxu0
    %v447 = vadd.f32 0.0, %v446
    %v448 = vpop.f32.mrb[0].mxu0
    %v449 = vpop.f32.mrb[0].mxu0
    %v450 = vpop.f32.mrb[0].mxu0
    %451 = vdwg.mxu0
    %v452 = vadd.f32 %v407, %v447
    %v453 = vxor.u32 %v452, 2147483648
    %v454 = vmul.f32 %v453, 1.442695
    %v455 = vpow.pop %v454
    %v456 = vadd.f32 %v455, 1.0
    %v457 = vrcp.pop %v456
    %v458 = vmul.f32 1.0, %v457
    %460 = vrot.lane.b32.xlu0 %v447, 96
    %v461 = vpop.permute.xlu0 %460
    %v463 = vmul.f32 %v458, %v461
    %465 = vrot.lane.b32.xlu0 %v463, 32
    %v466 = vpop.permute.xlu0 %465
    %v468 = vadd.f32 %v407, %v466
    %v469 = vtanh.pop %v468
    %v470 = vsub.f32 1.0, %v458
    %472 = vrot.lane.b32.xlu0 %v469, 64
    %v473 = vpop.permute.xlu0 %472
    %v475 = vmul.f32 %v470, %v473
    %v476 = vmul.f32 %v458, %v403
    %v477 = vadd.f32 %v475, %v476
    %s478 = scalar_lea.vmem [#allocation3], 24
    %479 = vst.msk [vmem:[%s478] sm:$0xff] %vm187, %v477
    %s480 = scalar_lea.vmem [#allocation2], 32
    %v481 = vld [vmem:[%s480] sm:$0xff]
    %v482 = vpack.c.bf16 %v477, %v477
    %v484 = vsel %vm187, %v482, 0
    %486 = vmatprep.subr.bf16.mxu0 0
    %487 = vmatpush1.bf16.msra.mxu0 %v183
    %488 = vmatprep.subr.bf16.mxu0 0
    %489 = vmatpush1.bf16.msra.mxu0 %v184
    %490 = vmatprep.subr.bf16.mxu0 0
    %491 = vmatpush1.bf16.msra.mxu0 0
    %492 = vmatprep.subr.bf16.mxu0 0
    %493 = vmatpush1.bf16.msra.mxu0 0
    %494 = vmatprep.subr.bf16.mxu0 0
    %495 = vmatpush1.bf16.msra.mxu0 0
    %496 = vmatprep.subr.bf16.mxu0 0
    %497 = vmatpush1.bf16.msra.mxu0 0
    %498 = vmatprep.subr.bf16.mxu0 0
    %499 = vmatpush1.bf16.msra.mxu0 0
    %500 = vmatprep.subr.bf16.mxu0 0
    %501 = vmatpush1.bf16.msra.mxu0 0
    %502 = vmatprep.subr.bf16.mxu0 0
    %503 = vmatpush1.bf16.msra.mxu0 0
    %504 = vmatprep.subr.bf16.mxu0 0
    %505 = vmatpush1.bf16.msra.mxu0 0
    %506 = vmatprep.subr.bf16.mxu0 0
    %507 = vmatpush1.bf16.msra.mxu0 0
    %508 = vmatprep.subr.bf16.mxu0 0
    %509 = vmatpush1.bf16.msra.mxu0 0
    %510 = vmatprep.subr.bf16.mxu0 0
    %511 = vmatpush1.bf16.msra.mxu0 0
    %512 = vmatprep.subr.bf16.mxu0 0
    %513 = vmatpush1.bf16.msra.mxu0 0
    %514 = vmatprep.subr.bf16.mxu0 0
    %515 = vmatpush1.bf16.msra.mxu0 0
    %516 = vmatprep.subr.bf16.mxu0 0
    %517 = vmatpush1.bf16.msra.mxu0 0
    %518 = vmatprep.mubr.bf16.mxu0 0
    %519 = vmatmul.mubr.bf16.gmra.mrb[0].mxu0 %v484
    %v520 = vpop.f32.mrb[0].mxu0
    %v521 = vadd.f32 0.0, %v520
    %v522 = vpop.f32.mrb[0].mxu0
    %v523 = vpop.f32.mrb[0].mxu0
    %v524 = vpop.f32.mrb[0].mxu0
    %525 = vdwg.mxu0
    %v526 = vadd.f32 %v481, %v521
    %v527 = vxor.u32 %v526, 2147483648
    %v528 = vmul.f32 %v527, 1.442695
    %v529 = vpow.pop %v528
    %v530 = vadd.f32 %v529, 1.0
    %v531 = vrcp.pop %v530
    %v532 = vmul.f32 1.0, %v531
    %534 = vrot.lane.b32.xlu0 %v521, 96
    %v535 = vpop.permute.xlu0 %534
    %v537 = vmul.f32 %v532, %v535
    %539 = vrot.lane.b32.xlu0 %v537, 32
    %v540 = vpop.permute.xlu0 %539
    %v542 = vadd.f32 %v481, %v540
    %v543 = vtanh.pop %v542
    %v544 = vsub.f32 1.0, %v532
    %546 = vrot.lane.b32.xlu0 %v543, 64
    %v547 = vpop.permute.xlu0 %546
    %v549 = vmul.f32 %v544, %v547
    %v550 = vmul.f32 %v532, %v477
    %v551 = vadd.f32 %v549, %v550
    %s552 = scalar_lea.vmem [#allocation3], 32
    %553 = vst.msk [vmem:[%s552] sm:$0xff] %vm187, %v551
    %s554 = scalar_lea.vmem [#allocation2], 40
    %v555 = vld [vmem:[%s554] sm:$0xff]
    %v556 = vpack.c.bf16 %v551, %v551
    %v558 = vsel %vm187, %v556, 0
    %560 = vmatprep.subr.bf16.mxu0 0
    %561 = vmatpush1.bf16.msra.mxu0 %v183
    %562 = vmatprep.subr.bf16.mxu0 0
    %563 = vmatpush1.bf16.msra.mxu0 %v184
    %564 = vmatprep.subr.bf16.mxu0 0
    %565 = vmatpush1.bf16.msra.mxu0 0
    %566 = vmatprep.subr.bf16.mxu0 0
    %567 = vmatpush1.bf16.msra.mxu0 0
    %568 = vmatprep.subr.bf16.mxu0 0
    %569 = vmatpush1.bf16.msra.mxu0 0
    %570 = vmatprep.subr.bf16.mxu0 0
    %571 = vmatpush1.bf16.msra.mxu0 0
    %572 = vmatprep.subr.bf16.mxu0 0
    %573 = vmatpush1.bf16.msra.mxu0 0
    %574 = vmatprep.subr.bf16.mxu0 0
    %575 = vmatpush1.bf16.msra.mxu0 0
    %576 = vmatprep.subr.bf16.mxu0 0
    %577 = vmatpush1.bf16.msra.mxu0 0
    %578 = vmatprep.subr.bf16.mxu0 0
    %579 = vmatpush1.bf16.msra.mxu0 0
    %580 = vmatprep.subr.bf16.mxu0 0
    %581 = vmatpush1.bf16.msra.mxu0 0
    %582 = vmatprep.subr.bf16.mxu0 0
    %583 = vmatpush1.bf16.msra.mxu0 0
    %584 = vmatprep.subr.bf16.mxu0 0
    %585 = vmatpush1.bf16.msra.mxu0 0
    %586 = vmatprep.subr.bf16.mxu0 0
    %587 = vmatpush1.bf16.msra.mxu0 0
    %588 = vmatprep.subr.bf16.mxu0 0
    %589 = vmatpush1.bf16.msra.mxu0 0
    %590 = vmatprep.subr.bf16.mxu0 0
    %591 = vmatpush1.bf16.msra.mxu0 0
    %592 = vmatprep.mubr.bf16.mxu0 0
    %593 = vmatmul.mubr.bf16.gmra.mrb[0].mxu0 %v558
    %v594 = vpop.f32.mrb[0].mxu0
    %v595 = vadd.f32 0.0, %v594
    %v596 = vpop.f32.mrb[0].mxu0
    %v597 = vpop.f32.mrb[0].mxu0
    %v598 = vpop.f32.mrb[0].mxu0
    %599 = vdwg.mxu0
    %v600 = vadd.f32 %v555, %v595
    %v601 = vxor.u32 %v600, 2147483648
    %v602 = vmul.f32 %v601, 1.442695
    %v603 = vpow.pop %v602
    %v604 = vadd.f32 %v603, 1.0
    %v605 = vrcp.pop %v604
    %v606 = vmul.f32 1.0, %v605
    %608 = vrot.lane.b32.xlu0 %v595, 96
    %v609 = vpop.permute.xlu0 %608
    %v611 = vmul.f32 %v606, %v609
    %613 = vrot.lane.b32.xlu0 %v611, 32
    %v614 = vpop.permute.xlu0 %613
    %v616 = vadd.f32 %v555, %v614
    %v617 = vtanh.pop %v616
    %v618 = vsub.f32 1.0, %v606
    %620 = vrot.lane.b32.xlu0 %v617, 64
    %v621 = vpop.permute.xlu0 %620
    %v623 = vmul.f32 %v618, %v621
    %v624 = vmul.f32 %v606, %v551
    %v625 = vadd.f32 %v623, %v624
    %s626 = scalar_lea.vmem [#allocation3], 40
    %627 = vst.msk [vmem:[%s626] sm:$0xff] %vm187, %v625
    %s628 = scalar_lea.vmem [#allocation2], 48
    %v629 = vld [vmem:[%s628] sm:$0xff]
    %v630 = vpack.c.bf16 %v625, %v625
    %v632 = vsel %vm187, %v630, 0
    %634 = vmatprep.subr.bf16.mxu0 0
    %635 = vmatpush1.bf16.msra.mxu0 %v183
    %636 = vmatprep.subr.bf16.mxu0 0
    %637 = vmatpush1.bf16.msra.mxu0 %v184
    %638 = vmatprep.subr.bf16.mxu0 0
    %639 = vmatpush1.bf16.msra.mxu0 0
    %640 = vmatprep.subr.bf16.mxu0 0
    %641 = vmatpush1.bf16.msra.mxu0 0
    %642 = vmatprep.subr.bf16.mxu0 0
    %643 = vmatpush1.bf16.msra.mxu0 0
    %644 = vmatprep.subr.bf16.mxu0 0
    %645 = vmatpush1.bf16.msra.mxu0 0
    %646 = vmatprep.subr.bf16.mxu0 0
    %647 = vmatpush1.bf16.msra.mxu0 0
    %648 = vmatprep.subr.bf16.mxu0 0
    %649 = vmatpush1.bf16.msra.mxu0 0
    %650 = vmatprep.subr.bf16.mxu0 0
    %651 = vmatpush1.bf16.msra.mxu0 0
    %652 = vmatprep.subr.bf16.mxu0 0
    %653 = vmatpush1.bf16.msra.mxu0 0
    %654 = vmatprep.subr.bf16.mxu0 0
    %655 = vmatpush1.bf16.msra.mxu0 0
    %656 = vmatprep.subr.bf16.mxu0 0
    %657 = vmatpush1.bf16.msra.mxu0 0
    %658 = vmatprep.subr.bf16.mxu0 0
    %659 = vmatpush1.bf16.msra.mxu0 0
    %660 = vmatprep.subr.bf16.mxu0 0
    %661 = vmatpush1.bf16.msra.mxu0 0
    %662 = vmatprep.subr.bf16.mxu0 0
    %663 = vmatpush1.bf16.msra.mxu0 0
    %664 = vmatprep.subr.bf16.mxu0 0
    %665 = vmatpush1.bf16.msra.mxu0 0
    %666 = vmatprep.mubr.bf16.mxu0 0
    %667 = vmatmul.mubr.bf16.gmra.mrb[0].mxu0 %v632
    %v668 = vpop.f32.mrb[0].mxu0
    %v669 = vadd.f32 0.0, %v668
    %v670 = vpop.f32.mrb[0].mxu0
    %v671 = vpop.f32.mrb[0].mxu0
    %v672 = vpop.f32.mrb[0].mxu0
    %673 = vdwg.mxu0
    %v674 = vadd.f32 %v629, %v669
    %v675 = vxor.u32 %v674, 2147483648
    %v676 = vmul.f32 %v675, 1.442695
    %v677 = vpow.pop %v676
    %v678 = vadd.f32 %v677, 1.0
    %v679 = vrcp.pop %v678
    %v680 = vmul.f32 1.0, %v679
    %682 = vrot.lane.b32.xlu0 %v669, 96
    %v683 = vpop.permute.xlu0 %682
    %v685 = vmul.f32 %v680, %v683
    %687 = vrot.lane.b32.xlu0 %v685, 32
    %v688 = vpop.permute.xlu0 %687
    %v690 = vadd.f32 %v629, %v688
    %v691 = vtanh.pop %v690
    %v692 = vsub.f32 1.0, %v680
    %694 = vrot.lane.b32.xlu0 %v691, 64
    %v695 = vpop.permute.xlu0 %694
    %v697 = vmul.f32 %v692, %v695
    %v698 = vmul.f32 %v680, %v625
    %v699 = vadd.f32 %v697, %v698
    %s700 = scalar_lea.vmem [#allocation3], 48
    %701 = vst.msk [vmem:[%s700] sm:$0xff] %vm187, %v699
    %s702 = scalar_lea.vmem [#allocation2], 56
    %v703 = vld [vmem:[%s702] sm:$0xff]
    %v704 = vpack.c.bf16 %v699, %v699
    %v706 = vsel %vm187, %v704, 0
    %708 = vmatprep.subr.bf16.mxu0 0
    %709 = vmatpush1.bf16.msra.mxu0 %v183
    %710 = vmatprep.subr.bf16.mxu0 0
    %711 = vmatpush1.bf16.msra.mxu0 %v184
    %712 = vmatprep.subr.bf16.mxu0 0
    %713 = vmatpush1.bf16.msra.mxu0 0
    %714 = vmatprep.subr.bf16.mxu0 0
    %715 = vmatpush1.bf16.msra.mxu0 0
    %716 = vmatprep.subr.bf16.mxu0 0
    %717 = vmatpush1.bf16.msra.mxu0 0
    %718 = vmatprep.subr.bf16.mxu0 0
    %719 = vmatpush1.bf16.msra.mxu0 0
    %720 = vmatprep.subr.bf16.mxu0 0
    %721 = vmatpush1.bf16.msra.mxu0 0
    %722 = vmatprep.subr.bf16.mxu0 0
    %723 = vmatpush1.bf16.msra.mxu0 0
    %724 = vmatprep.subr.bf16.mxu0 0
    %725 = vmatpush1.bf16.msra.mxu0 0
    %726 = vmatprep.subr.bf16.mxu0 0
    %727 = vmatpush1.bf16.msra.mxu0 0
    %728 = vmatprep.subr.bf16.mxu0 0
    %729 = vmatpush1.bf16.msra.mxu0 0
    %730 = vmatprep.subr.bf16.mxu0 0
    %731 = vmatpush1.bf16.msra.mxu0 0
    %732 = vmatprep.subr.bf16.mxu0 0
    %733 = vmatpush1.bf16.msra.mxu0 0
    %734 = vmatprep.subr.bf16.mxu0 0
    %735 = vmatpush1.bf16.msra.mxu0 0
    %736 = vmatprep.subr.bf16.mxu0 0
    %737 = vmatpush1.bf16.msra.mxu0 0
    %738 = vmatprep.subr.bf16.mxu0 0
    %739 = vmatpush1.bf16.msra.mxu0 0
    %740 = vmatprep.mubr.bf16.mxu0 0
    %741 = vmatmul.mubr.bf16.gmra.mrb[0].mxu0 %v706
    %v742 = vpop.f32.mrb[0].mxu0
    %v743 = vadd.f32 0.0, %v742
    %v744 = vpop.f32.mrb[0].mxu0
    %v745 = vpop.f32.mrb[0].mxu0
    %v746 = vpop.f32.mrb[0].mxu0
    %747 = vdwg.mxu0
    %v748 = vadd.f32 %v703, %v743
    %v749 = vxor.u32 %v748, 2147483648
    %v750 = vmul.f32 %v749, 1.442695
    %v751 = vpow.pop %v750
    %v752 = vadd.f32 %v751, 1.0
    %v753 = vrcp.pop %v752
    %v754 = vmul.f32 1.0, %v753
    %756 = vrot.lane.b32.xlu0 %v743, 96
    %v757 = vpop.permute.xlu0 %756
    %v759 = vmul.f32 %v754, %v757
    %761 = vrot.lane.b32.xlu0 %v759, 32
    %v762 = vpop.permute.xlu0 %761
    %v764 = vadd.f32 %v703, %v762
    %v765 = vtanh.pop %v764
    %v766 = vsub.f32 1.0, %v754
    %768 = vrot.lane.b32.xlu0 %v765, 64
    %v769 = vpop.permute.xlu0 %768
    %v771 = vmul.f32 %v766, %v769
    %v772 = vmul.f32 %v754, %v699
    %v773 = vadd.f32 %v771, %v772
    %s774 = scalar_lea.vmem [#allocation3], 56
    %775 = vst.msk [vmem:[%s774] sm:$0xff] %vm187, %v773
    %v776 = vld [vmem:[#allocation3] sm:$0xff]
    %v777 = vld [vmem:[#allocation3 + $0x8] sm:$0xff]
    %v778 = vld [vmem:[#allocation3 + $0x10] sm:$0xff]
    %v779 = vld [vmem:[#allocation3 + $0x18] sm:$0xff]
    %v780 = vld [vmem:[#allocation3 + $0x20] sm:$0xff]
    %v781 = vld [vmem:[#allocation3 + $0x28] sm:$0xff]
    %v782 = vld [vmem:[#allocation3 + $0x30] sm:$0xff]
    %v783 = vld [vmem:[#allocation3 + $0x38] sm:$0xff]
    %v784 = vpack.c.bf16 %v777, %v776
    %v785 = vpack.c.bf16 %v779, %v778
    %v786 = vpack.c.bf16 %v781, %v780
    %v787 = vpack.c.bf16 %v783, %v782
    %v788 = vld [vmem:[%s6] sm:$0xf]
    %v789 = vld [vmem:[%s6 + $0x4] sm:$0xf]
    %v790 = vld [vmem:[%s6 + $0x8] sm:$0xf]
    %v791 = vld [vmem:[%s6 + $0xc] sm:$0xf]
    %v792 = vld [vmem:[%s7] sm:$0x1]
    %v794 = vlaneseq
    %v795 = vshrl.u32 %v794, 7
    %v796 = vsub.s32 0, %v795
    %v797 = vrot.slane %v792, %v796
    %v803 = vunpack.c.l.b16 %v788
    %v804 = vunpack.c.l.b16 %v789
    %v805 = vunpack.c.l.b16 %v790
    %v806 = vunpack.c.l.b16 %v791
    %v807 = vpack.c.b16 %v804, %v803
    %v808 = vpack.c.b16 %v806, %v805
    %v812 = vsel %vm187, %v784, 0
    %v815 = vsel %vm187, %v785, 0
    %v818 = vsel %vm187, %v786, 0
    %v821 = vsel %vm187, %v787, 0
    %823 = vmatprep.subr.bf16.mxu0 0
    %824 = vmatpush1.bf16.msra.mxu0 %v807
    %825 = vmatprep.subr.bf16.mxu0 0
    %826 = vmatpush1.bf16.msra.mxu0 %v808
    %827 = vmatprep.subr.bf16.mxu0 0
    %828 = vmatpush1.bf16.msra.mxu0 0
    %829 = vmatprep.subr.bf16.mxu0 0
    %830 = vmatpush1.bf16.msra.mxu0 0
    %831 = vmatprep.subr.bf16.mxu0 0
    %832 = vmatpush1.bf16.msra.mxu0 0
    %833 = vmatprep.subr.bf16.mxu0 0
    %834 = vmatpush1.bf16.msra.mxu0 0
    %835 = vmatprep.subr.bf16.mxu0 0
    %836 = vmatpush1.bf16.msra.mxu0 0
    %837 = vmatprep.subr.bf16.mxu0 0
    %838 = vmatpush1.bf16.msra.mxu0 0
    %839 = vmatprep.subr.bf16.mxu0 0
    %840 = vmatpush1.bf16.msra.mxu0 0
    %841 = vmatprep.subr.bf16.mxu0 0
    %842 = vmatpush1.bf16.msra.mxu0 0
    %843 = vmatprep.subr.bf16.mxu0 0
    %844 = vmatpush1.bf16.msra.mxu0 0
    %845 = vmatprep.subr.bf16.mxu0 0
    %846 = vmatpush1.bf16.msra.mxu0 0
    %847 = vmatprep.subr.bf16.mxu0 0
    %848 = vmatpush1.bf16.msra.mxu0 0
    %849 = vmatprep.subr.bf16.mxu0 0
    %850 = vmatpush1.bf16.msra.mxu0 0
    %851 = vmatprep.subr.bf16.mxu0 0
    %852 = vmatpush1.bf16.msra.mxu0 0
    %853 = vmatprep.subr.bf16.mxu0 0
    %854 = vmatpush1.bf16.msra.mxu0 0
    %855 = vmatprep.mubr.bf16.mxu0 0
    %856 = vmatmul.mubr.bf16.gmra.mrb[0].mxu0 %v812
    %v857 = vpop.f32.mrb[0].mxu0
    %v858 = vadd.f32 %v797, %v857
    %v859 = vpop.f32.mrb[0].mxu0
    %v860 = vpop.f32.mrb[0].mxu0
    %v861 = vadd.f32 %v797, %v860
    %v862 = vpop.f32.mrb[0].mxu0
    %863 = vmatprep.mubr.bf16.mxu0 0
    %864 = vmatmul.mubr.bf16.gmra.mrb[0].mxu0 %v815
    %v865 = vpop.f32.mrb[0].mxu0
    %v866 = vadd.f32 %v797, %v865
    %v867 = vpop.f32.mrb[0].mxu0
    %v868 = vpop.f32.mrb[0].mxu0
    %v869 = vadd.f32 %v797, %v868
    %v870 = vpop.f32.mrb[0].mxu0
    %871 = vmatprep.mubr.bf16.mxu0 0
    %872 = vmatmul.mubr.bf16.gmra.mrb[0].mxu0 %v818
    %v873 = vpop.f32.mrb[0].mxu0
    %v874 = vadd.f32 %v797, %v873
    %v875 = vpop.f32.mrb[0].mxu0
    %v876 = vpop.f32.mrb[0].mxu0
    %v877 = vadd.f32 %v797, %v876
    %v878 = vpop.f32.mrb[0].mxu0
    %879 = vmatprep.mubr.bf16.mxu0 0
    %880 = vmatmul.mubr.bf16.gmra.mrb[0].mxu0 %v821
    %v881 = vpop.f32.mrb[0].mxu0
    %v882 = vadd.f32 %v797, %v881
    %v883 = vpop.f32.mrb[0].mxu0
    %v884 = vpop.f32.mrb[0].mxu0
    %v885 = vadd.f32 %v797, %v884
    %v886 = vpop.f32.mrb[0].mxu0
    %887 = vdwg.mxu0
    %888 = vmax.xlane.f32.xlu0 %v858
    %v889 = vpop.xlane.xlu0 %888
    %890 = vmax.xlane.f32.xlu0 %v861
    %v891 = vpop.xlane.xlu0 %890
    %892 = vmax.xlane.f32.xlu0 %v866
    %v893 = vpop.xlane.xlu0 %892
    %894 = vmax.xlane.f32.xlu0 %v869
    %v895 = vpop.xlane.xlu0 %894
    %896 = vmax.xlane.f32.xlu0 %v874
    %v897 = vpop.xlane.xlu0 %896
    %898 = vmax.xlane.f32.xlu0 %v877
    %v899 = vpop.xlane.xlu0 %898
    %900 = vmax.xlane.f32.xlu0 %v882
    %v901 = vpop.xlane.xlu0 %900
    %902 = vmax.xlane.f32.xlu0 %v885
    %v903 = vpop.xlane.xlu0 %902
    %v904 = vsub.f32 %v858, %v889
    %v905 = vsub.f32 %v861, %v891
    %v906 = vsub.f32 %v866, %v893
    %v907 = vsub.f32 %v869, %v895
    %v908 = vsub.f32 %v874, %v897
    %v909 = vsub.f32 %v877, %v899
    %v910 = vsub.f32 %v882, %v901
    %v911 = vsub.f32 %v885, %v903
    %v912 = vmul.f32 %v904, 1.442695
    %v913 = vpow.pop %v912
    %v914 = vmul.f32 %v905, 1.442695
    %v915 = vpow.pop %v914
    %v916 = vmul.f32 %v906, 1.442695
    %v917 = vpow.pop %v916
    %v918 = vmul.f32 %v907, 1.442695
    %v919 = vpow.pop %v918
    %v920 = vmul.f32 %v908, 1.442695
    %v921 = vpow.pop %v920
    %v922 = vmul.f32 %v909, 1.442695
    %v923 = vpow.pop %v922
    %v924 = vmul.f32 %v910, 1.442695
    %v925 = vpow.pop %v924
    %v926 = vmul.f32 %v911, 1.442695
    %v927 = vpow.pop %v926
    %928 = vadd.xlane.f32.xlu0 %v913
    %v929 = vpop.xlane.xlu0 %928
    %930 = vadd.xlane.f32.xlu0 %v915
    %v931 = vpop.xlane.xlu0 %930
    %932 = vadd.xlane.f32.xlu0 %v917
    %v933 = vpop.xlane.xlu0 %932
    %934 = vadd.xlane.f32.xlu0 %v919
    %v935 = vpop.xlane.xlu0 %934
    %936 = vadd.xlane.f32.xlu0 %v921
    %v937 = vpop.xlane.xlu0 %936
    %938 = vadd.xlane.f32.xlu0 %v923
    %v939 = vpop.xlane.xlu0 %938
    %940 = vadd.xlane.f32.xlu0 %v925
    %v941 = vpop.xlane.xlu0 %940
    %942 = vadd.xlane.f32.xlu0 %v927
    %v943 = vpop.xlane.xlu0 %942
    %v944 = vlog2.pop %v929
    %v945 = vmul.f32 %v944, 0.6931472
    %v946 = vlog2.pop %v931
    %v947 = vmul.f32 %v946, 0.6931472
    %v948 = vlog2.pop %v933
    %v949 = vmul.f32 %v948, 0.6931472
    %v950 = vlog2.pop %v935
    %v951 = vmul.f32 %v950, 0.6931472
    %v952 = vlog2.pop %v937
    %v953 = vmul.f32 %v952, 0.6931472
    %v954 = vlog2.pop %v939
    %v955 = vmul.f32 %v954, 0.6931472
    %v956 = vlog2.pop %v941
    %v957 = vmul.f32 %v956, 0.6931472
    %v958 = vlog2.pop %v943
    %v959 = vmul.f32 %v958, 0.6931472
    %v960 = vadd.f32 %v889, %v945
    %v961 = vadd.f32 %v891, %v947
    %v962 = vadd.f32 %v893, %v949
    %v963 = vadd.f32 %v895, %v951
    %v964 = vadd.f32 %v897, %v953
    %v965 = vadd.f32 %v899, %v955
    %v966 = vadd.f32 %v901, %v957
    %v967 = vadd.f32 %v903, %v959
    %v968 = vlaneseq
    %v969 = vand.u32 %v968, 127
    %v970 = vld [vmem:[%s1] sm:$0xff]
    %v971 = vld [vmem:[%s1 + $0x8] sm:$0xff]
    %v972 = vld [vmem:[%s1 + $0x10] sm:$0xff]
    %v973 = vld [vmem:[%s1 + $0x18] sm:$0xff]
    %v974 = vld [vmem:[%s1 + $0x20] sm:$0xff]
    %v975 = vld [vmem:[%s1 + $0x28] sm:$0xff]
    %v976 = vld [vmem:[%s1 + $0x30] sm:$0xff]
    %v977 = vld [vmem:[%s1 + $0x38] sm:$0xff]
    %978 = vset.pattern.permute.xlu0 0
    %979 = vperm.xlu0 %978, %v970
    %v980 = vpop.permute.xlu0 %979
    %981 = vset.pattern.permute.xlu0 0
    %982 = vperm.xlu0 %981, %v971
    %v983 = vpop.permute.xlu0 %982
    %984 = vset.pattern.permute.xlu0 0
    %985 = vperm.xlu0 %984, %v972
    %v986 = vpop.permute.xlu0 %985
    %987 = vset.pattern.permute.xlu0 0
    %988 = vperm.xlu0 %987, %v973
    %v989 = vpop.permute.xlu0 %988
    %990 = vset.pattern.permute.xlu0 0
    %991 = vperm.xlu0 %990, %v974
    %v992 = vpop.permute.xlu0 %991
    %993 = vset.pattern.permute.xlu0 0
    %994 = vperm.xlu0 %993, %v975
    %v995 = vpop.permute.xlu0 %994
    %996 = vset.pattern.permute.xlu0 0
    %997 = vperm.xlu0 %996, %v976
    %v998 = vpop.permute.xlu0 %997
    %999 = vset.pattern.permute.xlu0 0
    %1000 = vperm.xlu0 %999, %v977
    %v1001 = vpop.permute.xlu0 %1000
    %vm1002 = vcmp.eq.s32.totalorder %v969, %v980
    %vm1003 = vcmp.eq.s32.totalorder %v969, %v983
    %vm1004 = vcmp.eq.s32.totalorder %v969, %v986
    %vm1005 = vcmp.eq.s32.totalorder %v969, %v989
    %vm1006 = vcmp.eq.s32.totalorder %v969, %v992
    %vm1007 = vcmp.eq.s32.totalorder %v969, %v995
    %vm1008 = vcmp.eq.s32.totalorder %v969, %v998
    %vm1009 = vcmp.eq.s32.totalorder %v969, %v1001
    %v1010 = vsel %vm1002, %v858, 0.0
    %v1011 = vsel %vm1003, %v861, 0.0
    %v1012 = vsel %vm1004, %v866, 0.0
    %v1013 = vsel %vm1005, %v869, 0.0
    %v1014 = vsel %vm1006, %v874, 0.0
    %v1015 = vsel %vm1007, %v877, 0.0
    %v1016 = vsel %vm1008, %v882, 0.0
    %v1017 = vsel %vm1009, %v885, 0.0
    %1018 = vadd.xlane.f32.xlu0 %v1010
    %v1019 = vpop.xlane.xlu0 %1018
    %1020 = vadd.xlane.f32.xlu0 %v1011
    %v1021 = vpop.xlane.xlu0 %1020
    %1022 = vadd.xlane.f32.xlu0 %v1012
    %v1023 = vpop.xlane.xlu0 %1022
    %1024 = vadd.xlane.f32.xlu0 %v1013
    %v1025 = vpop.xlane.xlu0 %1024
    %1026 = vadd.xlane.f32.xlu0 %v1014
    %v1027 = vpop.xlane.xlu0 %1026
    %1028 = vadd.xlane.f32.xlu0 %v1015
    %v1029 = vpop.xlane.xlu0 %1028
    %1030 = vadd.xlane.f32.xlu0 %v1016
    %v1031 = vpop.xlane.xlu0 %1030
    %1032 = vadd.xlane.f32.xlu0 %v1017
    %v1033 = vpop.xlane.xlu0 %1032
    %v1034 = vsub.f32 %v960, %v1019
    %v1035 = vsub.f32 %v961, %v1021
    %v1036 = vsub.f32 %v962, %v1023
    %v1037 = vsub.f32 %v963, %v1025
    %v1038 = vsub.f32 %v964, %v1027
    %v1039 = vsub.f32 %v965, %v1029
    %v1040 = vsub.f32 %v966, %v1031
    %v1041 = vsub.f32 %v967, %v1033
    %vm1042 = vcmask 7168
    %v1043 = vsel %vm1042, %v1034, 0.0
    %v1044 = vsel %vm1042, %v1035, 0.0
    %v1045 = vadd.f32 %v1043, %v1044
    %v1046 = vsel %vm1042, %v1036, 0.0
    %v1047 = vadd.f32 %v1045, %v1046
    %v1048 = vsel %vm1042, %v1037, 0.0
    %v1049 = vadd.f32 %v1047, %v1048
    %v1050 = vsel %vm1042, %v1038, 0.0
    %v1051 = vadd.f32 %v1049, %v1050
    %v1052 = vsel %vm1042, %v1039, 0.0
    %v1053 = vadd.f32 %v1051, %v1052
    %v1054 = vsel %vm1042, %v1040, 0.0
    %v1055 = vadd.f32 %v1053, %v1054
    %v1056 = vsel %vm1042, %v1041, 0.0
    %v1057 = vadd.f32 %v1055, %v1056
    %1058 = vadd.xlane.f32.xlu0 %v1057
    %v1059 = vpop.xlane.xlu0 %1058
    %v1060 = vrot.slane %v1059, 4
    %v1061 = vadd.f32 %v1059, %v1060
    %v1062 = vrot.slane %v1061, 2
    %v1063 = vadd.f32 %v1061, %v1062
    %v1064 = vrot.slane %v1063, 1
    %v1065 = vadd.f32 %v1063, %v1064
    %s1066 = vtos %v1065
    %v1067 = vstv %s1066
    %vm1068 = vcmask 0
    %1069 = vst.msk [vmem:[#allocation4] sm:$0x1] %vm1068, %v1067
    // Predicated region
    $region34: #{doggen_forward.1} parent=1 // pred_check
      _
    $region35: #{doggen_forward.1} parent=1 // pred_check_branch
      %1071 = sbr.rel (0) target = $region37
    $region36: #{doggen_forward.1} parent=1 // pred_region
      %s1073 = ssub.s32 16, 16
      %1074 = vsyncadd [#allocation5], %s1073
      %s1076 = sshll.u32 [#allocation4], 4
      %s1077 = int_to_ptr.vmem [resolvable:$true] %s1076
      %1079 = dma.vmem_to_hbm [thread:$0]  %s1077, 16, %s8, [#allocation5]
    $region37: #{doggen_forward.1} parent=1 // pred_fallthru
      _
    // Predicated region
    $region38: #{doggen_forward.1} parent=1 // pred_check
      _
    $region39: #{doggen_forward.1} parent=1 // pred_check_branch
      %1081 = sbr.rel (0) target = $region41
    $region40: #{doggen_forward.1} parent=1 // pred_region
      %1082 = dma.done [#allocation5], 16
    $region41: #{doggen_forward.1} parent=1 // pred_fallthru
      _
    %1083 = vsyncpa [#allocation5], 1

</llo_original>
